<compile_context>
chip_gen: v7x
topology: tpu7x:2x2x1
jax: 0.10.0
libtpu: 0.0.40
codegen_flags: <defaults>
</compile_context>

<pallas_src>
import jax
import jax.numpy as jnp
from jax.experimental import pallas as pl
from jax.experimental.pallas import tpu as pltpu


def _net_a2s_kernel(
    x_ref,
    w_in_ref, b_in_ref,
    w_64_128_ref, b_64_128_ref,
    w_128_256_ref, b_128_256_ref,
    w_256_128_ref, b_256_128_ref,
    w_256_64a_ref, w_256_64b_ref, b_256_64_ref,
    w_128_64a_ref, w_128_64b_ref, b_128_64_ref,
    w_out_ref, b_out_ref,
    out_ref,
):
    compute_dtype = w_in_ref.dtype  # bf16 (default) or f32

    def mm(w_ref, h):
        # (Cout, Cin) @ (Cin, tl) -> (Cout, tl); MXU with f32 accumulation.
        return jnp.dot(w_ref[...], h, preferred_element_type=jnp.float32)

    def epilogue(acc_f32, b_ref):
        # bias + ReLU in f32 (safe on v5e's non-bf16 VPU), broadcast over lanes.
        return jnp.maximum(acc_f32 + b_ref[...], 0.0)

    x = x_ref[0].astype(compute_dtype)                                   # (bands, tl)

    x_64 = epilogue(mm(w_in_ref, x), b_in_ref).astype(compute_dtype)     # (64, tl)
    x_128 = epilogue(mm(w_64_128_ref, x_64), b_64_128_ref).astype(compute_dtype)
    x_256 = epilogue(mm(w_128_256_ref, x_128), b_128_256_ref).astype(compute_dtype)
    xl_128 = epilogue(mm(w_256_128_ref, x_256), b_256_128_ref).astype(compute_dtype)

    # concat([x_128, xl_128], channels) @ W  ==  W[:, :128] @ x_128 + W[:, 128:] @ xl_128
    yl_64 = epilogue(mm(w_256_64a_ref, x_128) + mm(w_256_64b_ref, xl_128),
                     b_256_64_ref).astype(compute_dtype)
    # concat([x_64, yl_64], channels) @ W  ==  W[:, :64] @ x_64 + W[:, 64:] @ yl_64
    y_64 = epilogue(mm(w_128_64a_ref, x_64) + mm(w_128_64b_ref, yl_64),
                    b_128_64_ref).astype(compute_dtype)

    y = epilogue(mm(w_out_ref, y_64), b_out_ref)                         # (bands, tl) f32
    out_ref[0] = y.astype(out_ref.dtype)


def net_a2s_forward(x_ncl, params, *, tl=512, use_bf16=True):
    """x_ncl: (N, bands, L) float32 -> (N, bands, L) float32.

    tl is the lane (L) tile; 512 keeps the MXU saturated while using only a few
    MiB of VMEM (safe on v7x's 64 MiB); values up to ~2048 are fine everywhere.
    """
    N, bands, L = x_ncl.shape
    compute_dtype = jnp.bfloat16 if use_bf16 else jnp.float32

    # Lane tile: full L for small inputs, else a multiple of 128 (pad L up).
    if L <= tl:
        tl = L
        L_pad = L
    else:
        tl = max(128, (tl // 128) * 128)
        L_pad = ((L + tl - 1) // tl) * tl
    x_p = x_ncl if L_pad == L else jnp.pad(
        x_ncl, ((0, 0), (0, 0), (0, L_pad - L)))

    # Weights stay in PyTorch Conv1d layout (Cout, Cin); biases become (Cout, 1).
    def wb(name):
        w, b = params[name]
        return w.astype(compute_dtype), b.reshape(-1, 1).astype(jnp.float32)

    w_in, b_in = wb("in")
    w1, b1 = wb("64_128")
    w2, b2 = wb("128_256")
    w3, b3 = wb("256_128")
    w4, b4 = wb("256_64")
    w5, b5 = wb("128_64")
    w_out, b_out = wb("out")

    # Split the concat-consuming weights so the kernel can accumulate two dots
    # instead of materializing (Cin, tl) concat buffers.
    flat = [
        w_in, b_in, w1, b1, w2, b2, w3, b3,
        w4[:, :128], w4[:, 128:], b4,
        w5[:, :64], w5[:, 64:], b5,
        w_out, b_out,
    ]

    def full_spec(a):
        return pl.BlockSpec(a.shape, lambda n, l: (0, 0))

    io_spec = pl.BlockSpec((1, bands, tl), lambda n, l: (n, 0, l))
    in_specs = [io_spec] + [full_spec(a) for a in flat]

    macs_per_pos = (bands * 64 + 64 * 128 + 128 * 256 + 256 * 128
                    + 256 * 64 + 128 * 64 + 64 * bands)
    weight_bytes = sum(int(a.size) * a.dtype.itemsize for a in flat)
    cost = pl.CostEstimate(
        flops=2 * N * L_pad * macs_per_pos,
        transcendentals=0,
        bytes_accessed=2 * N * L_pad * bands * 4 + weight_bytes,
    )

    out = pl.pallas_call(
        _net_a2s_kernel,
        out_shape=jax.ShapeDtypeStruct((N, bands, L_pad), jnp.float32),
        grid_spec=pltpu.PrefetchScalarGridSpec(
            num_scalar_prefetch=0,
            grid=(N, L_pad // tl),
            in_specs=in_specs,
            out_specs=io_spec,
        ),
        compiler_params=pltpu.CompilerParams(
            dimension_semantics=("parallel", "parallel"),
        ),
        cost_estimate=cost,
    )(x_p, *flat)

    return out if L_pad == L else out[:, :, :L]


def init_params(bands, key):
    """Deterministic synthetic weights matching nn.Conv1d(cin, cout, 1):
    weight (cout, cin) [kernel dim squeezed], bias (cout,)."""
    dims = {
        "in": (bands, 64),
        "64_128": (64, 128),
        "128_256": (128, 256),
        "256_128": (256, 128),
        "256_64": (256, 64),
        "128_64": (128, 64),
        "out": (64, bands),
    }
    params = {}
    for i, (name, (cin, cout)) in enumerate(dims.items()):
        kw, kb = jax.random.split(jax.random.fold_in(key, i))
        scale = 1.0 / jnp.sqrt(cin)
        w = jax.random.uniform(kw, (cout, cin), jnp.float32, -scale, scale)
        b = jax.random.uniform(kb, (cout,), jnp.float32, -scale, scale)
        params[name] = (w, b)
    return params


def net_a2s_ref(x_ncl, params, *, use_bf16=True):
    """Pure-JAX reference in NCL layout (mirrors the kernel's bf16 matmul operands)."""
    cdt = jnp.bfloat16 if use_bf16 else jnp.float32

    def convb(h, name):
        w, b = params[name]
        y = jnp.einsum("oc,ncl->nol", w.astype(cdt), h.astype(cdt),
                       preferred_element_type=jnp.float32)
        return jnp.maximum(y + b[None, :, None], 0.0)

    x_64 = convb(x_ncl, "in")
    x_128 = convb(x_64, "64_128")
    x_256 = convb(x_128, "128_256")
    xl_128 = convb(x_256, "256_128")
    y_256 = jnp.concatenate([x_128, xl_128], axis=-2)
    yl_64 = convb(y_256, "256_64")
    y_128 = jnp.concatenate([x_64, yl_64], axis=-2)
    y_64 = convb(y_128, "128_64")
    return convb(y_64, "out")


if __name__ == "__main__":
    key = jax.random.PRNGKey(0)
    bands, N, L = 4, 2, 16   # input: (N, bands, L) = (2, 4, 16)

    kx, kp = jax.random.split(key)
    x = jax.random.normal(kx, (N, bands, L), jnp.float32)
    params = init_params(bands, kp)

    y = net_a2s_forward(x, params)
    y = jax.block_until_ready(y)

    # Compare against a reference that uses the same bf16 matmul operands
    # (f32-exact semantics are available via use_bf16=False on both paths).
    y_ref = net_a2s_ref(x, params)
    assert y.shape == (N, bands, L)
    assert jnp.allclose(y, y_ref, atol=1e-2, rtol=1e-2), float(
        jnp.max(jnp.abs(y - y_ref)))

    print("KERNEL_OK")
</pallas_src>

<mosaic_0001>
module attributes {stable_mosaic.version = 11 : i64} {
  func.func @_net_a2s_kernel(%arg0: i32, %arg1: i32, %arg2: memref<1x4x16xf32, #tpu.memory_space<vmem>>, %arg3: memref<64x4xbf16, #tpu.memory_space<vmem>>, %arg4: memref<64x1xf32, #tpu.memory_space<vmem>>, %arg5: memref<128x64xbf16, #tpu.memory_space<vmem>>, %arg6: memref<128x1xf32, #tpu.memory_space<vmem>>, %arg7: memref<256x128xbf16, #tpu.memory_space<vmem>>, %arg8: memref<256x1xf32, #tpu.memory_space<vmem>>, %arg9: memref<128x256xbf16, #tpu.memory_space<vmem>>, %arg10: memref<128x1xf32, #tpu.memory_space<vmem>>, %arg11: memref<64x128xbf16, #tpu.memory_space<vmem>>, %arg12: memref<64x128xbf16, #tpu.memory_space<vmem>>, %arg13: memref<64x1xf32, #tpu.memory_space<vmem>>, %arg14: memref<64x64xbf16, #tpu.memory_space<vmem>>, %arg15: memref<64x64xbf16, #tpu.memory_space<vmem>>, %arg16: memref<64x1xf32, #tpu.memory_space<vmem>>, %arg17: memref<4x64xbf16, #tpu.memory_space<vmem>>, %arg18: memref<4x1xf32, #tpu.memory_space<vmem>>, %arg19: memref<1x4x16xf32, #tpu.memory_space<vmem>>) attributes {dimension_semantics = [#tpu.dimension_semantics<parallel>, #tpu.dimension_semantics<parallel>], iteration_bounds = array<i64: 2, 1>, scalar_prefetch = 0 : i64, scratch_operands = 0 : i64, tpu.core_type = #tpu.core_type<tc>, window_params = [{transform_indices = @transform_0, window_bounds = array<i64: 1, 4, 16>}, {pipeline_mode = #tpu.pipeline_mode<synchronous>, transform_indices = @transform_1, window_bounds = array<i64: 64, 4>}, {pipeline_mode = #tpu.pipeline_mode<synchronous>, transform_indices = @transform_2, window_bounds = array<i64: 64, 1>}, {pipeline_mode = #tpu.pipeline_mode<synchronous>, transform_indices = @transform_3, window_bounds = array<i64: 128, 64>}, {pipeline_mode = #tpu.pipeline_mode<synchronous>, transform_indices = @transform_4, window_bounds = array<i64: 128, 1>}, {pipeline_mode = #tpu.pipeline_mode<synchronous>, transform_indices = @transform_5, window_bounds = array<i64: 256, 128>}, {pipeline_mode = #tpu.pipeline_mode<synchronous>, transform_indices = @transform_6, window_bounds = array<i64: 256, 1>}, {pipeline_mode = #tpu.pipeline_mode<synchronous>, transform_indices = @transform_7, window_bounds = array<i64: 128, 256>}, {pipeline_mode = #tpu.pipeline_mode<synchronous>, transform_indices = @transform_8, window_bounds = array<i64: 128, 1>}, {pipeline_mode = #tpu.pipeline_mode<synchronous>, transform_indices = @transform_9, window_bounds = array<i64: 64, 128>}, {pipeline_mode = #tpu.pipeline_mode<synchronous>, transform_indices = @transform_10, window_bounds = array<i64: 64, 128>}, {pipeline_mode = #tpu.pipeline_mode<synchronous>, transform_indices = @transform_11, window_bounds = array<i64: 64, 1>}, {pipeline_mode = #tpu.pipeline_mode<synchronous>, transform_indices = @transform_12, window_bounds = array<i64: 64, 64>}, {pipeline_mode = #tpu.pipeline_mode<synchronous>, transform_indices = @transform_13, window_bounds = array<i64: 64, 64>}, {pipeline_mode = #tpu.pipeline_mode<synchronous>, transform_indices = @transform_14, window_bounds = array<i64: 64, 1>}, {pipeline_mode = #tpu.pipeline_mode<synchronous>, transform_indices = @transform_15, window_bounds = array<i64: 4, 64>}, {pipeline_mode = #tpu.pipeline_mode<synchronous>, transform_indices = @transform_16, window_bounds = array<i64: 4, 1>}, {transform_indices = @transform_17, window_bounds = array<i64: 1, 4, 16>}]} {
    %c0 = arith.constant 0 : index
    %c0_0 = arith.constant 0 : index
    %c0_1 = arith.constant 0 : index
    %0 = vector.load %arg2[%c0, %c0_0, %c0_1] : memref<1x4x16xf32, #tpu.memory_space<vmem>>, vector<1x4x16xf32>
    %1 = vector.shape_cast %0 : vector<1x4x16xf32> to vector<4x16xf32>
    %2 = arith.truncf %1 : vector<4x16xf32> to vector<4x16xbf16>
    %c0_2 = arith.constant 0 : index
    %c0_3 = arith.constant 0 : index
    %3 = vector.load %arg3[%c0_2, %c0_3] : memref<64x4xbf16, #tpu.memory_space<vmem>>, vector<64x4xbf16>
    %cst = arith.constant dense<0.000000e+00> : vector<64x16xf32>
    %4 = tpu.matmul %3, %2, %cst {dimension_numbers = #tpu.dot_dimension_numbers<[1], [0], [0], [1], [0, 0, 1, 1], [], []>} : vector<64x4xbf16>, vector<4x16xbf16>, vector<64x16xf32> -> vector<64x16xf32>
    %c0_4 = arith.constant 0 : index
    %c0_5 = arith.constant 0 : index
    %5 = vector.load %arg4[%c0_4, %c0_5] : memref<64x1xf32, #tpu.memory_space<vmem>>, vector<64x1xf32>
    %6 = vector.broadcast %5 : vector<64x1xf32> to vector<64x16xf32>
    %7 = arith.addf %4, %6 : vector<64x16xf32>
    %cst_6 = arith.constant 0.000000e+00 : f32
    %8 = vector.broadcast %cst_6 : f32 to vector<64x16xf32>
    %9 = arith.maximumf %7, %8 : vector<64x16xf32>
    %10 = arith.truncf %9 : vector<64x16xf32> to vector<64x16xbf16>
    %c0_7 = arith.constant 0 : index
    %c0_8 = arith.constant 0 : index
    %11 = vector.load %arg5[%c0_7, %c0_8] : memref<128x64xbf16, #tpu.memory_space<vmem>>, vector<128x64xbf16>
    %cst_9 = arith.constant dense<0.000000e+00> : vector<128x16xf32>
    %12 = tpu.matmul %11, %10, %cst_9 {dimension_numbers = #tpu.dot_dimension_numbers<[1], [0], [0], [1], [0, 0, 1, 1], [], []>} : vector<128x64xbf16>, vector<64x16xbf16>, vector<128x16xf32> -> vector<128x16xf32>
    %c0_10 = arith.constant 0 : index
    %c0_11 = arith.constant 0 : index
    %13 = vector.load %arg6[%c0_10, %c0_11] : memref<128x1xf32, #tpu.memory_space<vmem>>, vector<128x1xf32>
    %14 = vector.broadcast %13 : vector<128x1xf32> to vector<128x16xf32>
    %15 = arith.addf %12, %14 : vector<128x16xf32>
    %cst_12 = arith.constant 0.000000e+00 : f32
    %16 = vector.broadcast %cst_12 : f32 to vector<128x16xf32>
    %17 = arith.maximumf %15, %16 : vector<128x16xf32>
    %18 = arith.truncf %17 : vector<128x16xf32> to vector<128x16xbf16>
    %c0_13 = arith.constant 0 : index
    %c0_14 = arith.constant 0 : index
    %19 = vector.load %arg7[%c0_13, %c0_14] : memref<256x128xbf16, #tpu.memory_space<vmem>>, vector<256x128xbf16>
    %cst_15 = arith.constant dense<0.000000e+00> : vector<256x16xf32>
    %20 = tpu.matmul %19, %18, %cst_15 {dimension_numbers = #tpu.dot_dimension_numbers<[1], [0], [0], [1], [0, 0, 1, 1], [], []>} : vector<256x128xbf16>, vector<128x16xbf16>, vector<256x16xf32> -> vector<256x16xf32>
    %c0_16 = arith.constant 0 : index
    %c0_17 = arith.constant 0 : index
    %21 = vector.load %arg8[%c0_16, %c0_17] : memref<256x1xf32, #tpu.memory_space<vmem>>, vector<256x1xf32>
    %22 = vector.broadcast %21 : vector<256x1xf32> to vector<256x16xf32>
    %23 = arith.addf %20, %22 : vector<256x16xf32>
    %cst_18 = arith.constant 0.000000e+00 : f32
    %24 = vector.broadcast %cst_18 : f32 to vector<256x16xf32>
    %25 = arith.maximumf %23, %24 : vector<256x16xf32>
    %26 = arith.truncf %25 : vector<256x16xf32> to vector<256x16xbf16>
    %c0_19 = arith.constant 0 : index
    %c0_20 = arith.constant 0 : index
    %27 = vector.load %arg9[%c0_19, %c0_20] : memref<128x256xbf16, #tpu.memory_space<vmem>>, vector<128x256xbf16>
    %cst_21 = arith.constant dense<0.000000e+00> : vector<128x16xf32>
    %28 = tpu.matmul %27, %26, %cst_21 {dimension_numbers = #tpu.dot_dimension_numbers<[1], [0], [0], [1], [0, 0, 1, 1], [], []>} : vector<128x256xbf16>, vector<256x16xbf16>, vector<128x16xf32> -> vector<128x16xf32>
    %c0_22 = arith.constant 0 : index
    %c0_23 = arith.constant 0 : index
    %29 = vector.load %arg10[%c0_22, %c0_23] : memref<128x1xf32, #tpu.memory_space<vmem>>, vector<128x1xf32>
    %30 = vector.broadcast %29 : vector<128x1xf32> to vector<128x16xf32>
    %31 = arith.addf %28, %30 : vector<128x16xf32>
    %cst_24 = arith.constant 0.000000e+00 : f32
    %32 = vector.broadcast %cst_24 : f32 to vector<128x16xf32>
    %33 = arith.maximumf %31, %32 : vector<128x16xf32>
    %34 = arith.truncf %33 : vector<128x16xf32> to vector<128x16xbf16>
    %c0_25 = arith.constant 0 : index
    %c0_26 = arith.constant 0 : index
    %35 = vector.load %arg11[%c0_25, %c0_26] : memref<64x128xbf16, #tpu.memory_space<vmem>>, vector<64x128xbf16>
    %cst_27 = arith.constant dense<0.000000e+00> : vector<64x16xf32>
    %36 = tpu.matmul %35, %18, %cst_27 {dimension_numbers = #tpu.dot_dimension_numbers<[1], [0], [0], [1], [0, 0, 1, 1], [], []>} : vector<64x128xbf16>, vector<128x16xbf16>, vector<64x16xf32> -> vector<64x16xf32>
    %c0_28 = arith.constant 0 : index
    %c0_29 = arith.constant 0 : index
    %37 = vector.load %arg12[%c0_28, %c0_29] : memref<64x128xbf16, #tpu.memory_space<vmem>>, vector<64x128xbf16>
    %cst_30 = arith.constant dense<0.000000e+00> : vector<64x16xf32>
    %38 = tpu.matmul %37, %34, %cst_30 {dimension_numbers = #tpu.dot_dimension_numbers<[1], [0], [0], [1], [0, 0, 1, 1], [], []>} : vector<64x128xbf16>, vector<128x16xbf16>, vector<64x16xf32> -> vector<64x16xf32>
    %39 = arith.addf %36, %38 : vector<64x16xf32>
    %c0_31 = arith.constant 0 : index
    %c0_32 = arith.constant 0 : index
    %40 = vector.load %arg13[%c0_31, %c0_32] : memref<64x1xf32, #tpu.memory_space<vmem>>, vector<64x1xf32>
    %41 = vector.broadcast %40 : vector<64x1xf32> to vector<64x16xf32>
    %42 = arith.addf %39, %41 : vector<64x16xf32>
    %cst_33 = arith.constant 0.000000e+00 : f32
    %43 = vector.broadcast %cst_33 : f32 to vector<64x16xf32>
    %44 = arith.maximumf %42, %43 : vector<64x16xf32>
    %45 = arith.truncf %44 : vector<64x16xf32> to vector<64x16xbf16>
    %c0_34 = arith.constant 0 : index
    %c0_35 = arith.constant 0 : index
    %46 = vector.load %arg14[%c0_34, %c0_35] : memref<64x64xbf16, #tpu.memory_space<vmem>>, vector<64x64xbf16>
    %cst_36 = arith.constant dense<0.000000e+00> : vector<64x16xf32>
    %47 = tpu.matmul %46, %10, %cst_36 {dimension_numbers = #tpu.dot_dimension_numbers<[1], [0], [0], [1], [0, 0, 1, 1], [], []>} : vector<64x64xbf16>, vector<64x16xbf16>, vector<64x16xf32> -> vector<64x16xf32>
    %c0_37 = arith.constant 0 : index
    %c0_38 = arith.constant 0 : index
    %48 = vector.load %arg15[%c0_37, %c0_38] : memref<64x64xbf16, #tpu.memory_space<vmem>>, vector<64x64xbf16>
    %cst_39 = arith.constant dense<0.000000e+00> : vector<64x16xf32>
    %49 = tpu.matmul %48, %45, %cst_39 {dimension_numbers = #tpu.dot_dimension_numbers<[1], [0], [0], [1], [0, 0, 1, 1], [], []>} : vector<64x64xbf16>, vector<64x16xbf16>, vector<64x16xf32> -> vector<64x16xf32>
    %50 = arith.addf %47, %49 : vector<64x16xf32>
    %c0_40 = arith.constant 0 : index
    %c0_41 = arith.constant 0 : index
    %51 = vector.load %arg16[%c0_40, %c0_41] : memref<64x1xf32, #tpu.memory_space<vmem>>, vector<64x1xf32>
    %52 = vector.broadcast %51 : vector<64x1xf32> to vector<64x16xf32>
    %53 = arith.addf %50, %52 : vector<64x16xf32>
    %cst_42 = arith.constant 0.000000e+00 : f32
    %54 = vector.broadcast %cst_42 : f32 to vector<64x16xf32>
    %55 = arith.maximumf %53, %54 : vector<64x16xf32>
    %56 = arith.truncf %55 : vector<64x16xf32> to vector<64x16xbf16>
    %c0_43 = arith.constant 0 : index
    %c0_44 = arith.constant 0 : index
    %57 = vector.load %arg17[%c0_43, %c0_44] : memref<4x64xbf16, #tpu.memory_space<vmem>>, vector<4x64xbf16>
    %cst_45 = arith.constant dense<0.000000e+00> : vector<4x16xf32>
    %58 = tpu.matmul %57, %56, %cst_45 {dimension_numbers = #tpu.dot_dimension_numbers<[1], [0], [0], [1], [0, 0, 1, 1], [], []>} : vector<4x64xbf16>, vector<64x16xbf16>, vector<4x16xf32> -> vector<4x16xf32>
    %c0_46 = arith.constant 0 : index
    %c0_47 = arith.constant 0 : index
    %59 = vector.load %arg18[%c0_46, %c0_47] : memref<4x1xf32, #tpu.memory_space<vmem>>, vector<4x1xf32>
    %60 = vector.broadcast %59 : vector<4x1xf32> to vector<4x16xf32>
    %61 = arith.addf %58, %60 : vector<4x16xf32>
    %cst_48 = arith.constant 0.000000e+00 : f32
    %62 = vector.broadcast %cst_48 : f32 to vector<4x16xf32>
    %63 = arith.maximumf %61, %62 : vector<4x16xf32>
    %c0_49 = arith.constant 0 : index
    %c0_50 = arith.constant 0 : index
    %c0_51 = arith.constant 0 : index
    %64 = vector.load %arg19[%c0_49, %c0_50, %c0_51] : memref<1x4x16xf32, #tpu.memory_space<vmem>>, vector<1x4x16xf32>
    %65 = vector.shape_cast %64 : vector<1x4x16xf32> to vector<4x16xf32>
    %66 = vector.shape_cast %63 : vector<4x16xf32> to vector<1x4x16xf32>
    tpu.vector_store %arg19[%c0_49, %c0_50, %c0_51], %66 {strides = array<i32>} : memref<1x4x16xf32, #tpu.memory_space<vmem>>, vector<1x4x16xf32>,
    return
  }
  func.func @transform_0(%arg0: i32, %arg1: i32) -> (i32, i32, i32) {
    %c0_i32 = arith.constant 0 : i32
    %c0_i32_0 = arith.constant 0 : i32
    return %arg0, %c0_i32, %arg1 : i32, i32, i32
  }
  func.func @transform_1(%arg0: i32, %arg1: i32) -> (i32, i32) {
    %c0_i32 = arith.constant 0 : i32
    %c0_i32_0 = arith.constant 0 : i32
    %c0_i32_1 = arith.constant 0 : i32
    return %c0_i32, %c0_i32_0 : i32, i32
  }
  func.func @transform_2(%arg0: i32, %arg1: i32) -> (i32, i32) {
    %c0_i32 = arith.constant 0 : i32
    %c0_i32_0 = arith.constant 0 : i32
    %c0_i32_1 = arith.constant 0 : i32
    return %c0_i32, %c0_i32_0 : i32, i32
  }
  func.func @transform_3(%arg0: i32, %arg1: i32) -> (i32, i32) {
    %c0_i32 = arith.constant 0 : i32
    %c0_i32_0 = arith.constant 0 : i32
    %c0_i32_1 = arith.constant 0 : i32
    return %c0_i32, %c0_i32_0 : i32, i32
  }
  func.func @transform_4(%arg0: i32, %arg1: i32) -> (i32, i32) {
    %c0_i32 = arith.constant 0 : i32
    %c0_i32_0 = arith.constant 0 : i32
    %c0_i32_1 = arith.constant 0 : i32
    return %c0_i32, %c0_i32_0 : i32, i32
  }
  func.func @transform_5(%arg0: i32, %arg1: i32) -> (i32, i32) {
    %c0_i32 = arith.constant 0 : i32
    %c0_i32_0 = arith.constant 0 : i32
    %c0_i32_1 = arith.constant 0 : i32
    return %c0_i32, %c0_i32_0 : i32, i32
  }
  func.func @transform_6(%arg0: i32, %arg1: i32) -> (i32, i32) {
    %c0_i32 = arith.constant 0 : i32
    %c0_i32_0 = arith.constant 0 : i32
    %c0_i32_1 = arith.constant 0 : i32
    return %c0_i32, %c0_i32_0 : i32, i32
  }
  func.func @transform_7(%arg0: i32, %arg1: i32) -> (i32, i32) {
    %c0_i32 = arith.constant 0 : i32
    %c0_i32_0 = arith.constant 0 : i32
    %c0_i32_1 = arith.constant 0 : i32
    return %c0_i32, %c0_i32_0 : i32, i32
  }
  func.func @transform_8(%arg0: i32, %arg1: i32) -> (i32, i32) {
    %c0_i32 = arith.constant 0 : i32
    %c0_i32_0 = arith.constant 0 : i32
    %c0_i32_1 = arith.constant 0 : i32
    return %c0_i32, %c0_i32_0 : i32, i32
  }
  func.func @transform_9(%arg0: i32, %arg1: i32) -> (i32, i32) {
    %c0_i32 = arith.constant 0 : i32
    %c0_i32_0 = arith.constant 0 : i32
    %c0_i32_1 = arith.constant 0 : i32
    return %c0_i32, %c0_i32_0 : i32, i32
  }
  func.func @transform_10(%arg0: i32, %arg1: i32) -> (i32, i32) {
    %c0_i32 = arith.constant 0 : i32
    %c0_i32_0 = arith.constant 0 : i32
    %c0_i32_1 = arith.constant 0 : i32
    return %c0_i32, %c0_i32_0 : i32, i32
  }
  func.func @transform_11(%arg0: i32, %arg1: i32) -> (i32, i32) {
    %c0_i32 = arith.constant 0 : i32
    %c0_i32_0 = arith.constant 0 : i32
    %c0_i32_1 = arith.constant 0 : i32
    return %c0_i32, %c0_i32_0 : i32, i32
  }
  func.func @transform_12(%arg0: i32, %arg1: i32) -> (i32, i32) {
    %c0_i32 = arith.constant 0 : i32
    %c0_i32_0 = arith.constant 0 : i32
    %c0_i32_1 = arith.constant 0 : i32
    return %c0_i32, %c0_i32_0 : i32, i32
  }
  func.func @transform_13(%arg0: i32, %arg1: i32) -> (i32, i32) {
    %c0_i32 = arith.constant 0 : i32
    %c0_i32_0 = arith.constant 0 : i32
    %c0_i32_1 = arith.constant 0 : i32
    return %c0_i32, %c0_i32_0 : i32, i32
  }
  func.func @transform_14(%arg0: i32, %arg1: i32) -> (i32, i32) {
    %c0_i32 = arith.constant 0 : i32
    %c0_i32_0 = arith.constant 0 : i32
    %c0_i32_1 = arith.constant 0 : i32
    return %c0_i32, %c0_i32_0 : i32, i32
  }
  func.func @transform_15(%arg0: i32, %arg1: i32) -> (i32, i32) {
    %c0_i32 = arith.constant 0 : i32
    %c0_i32_0 = arith.constant 0 : i32
    %c0_i32_1 = arith.constant 0 : i32
    return %c0_i32, %c0_i32_0 : i32, i32
  }
  func.func @transform_16(%arg0: i32, %arg1: i32) -> (i32, i32) {
    %c0_i32 = arith.constant 0 : i32
    %c0_i32_0 = arith.constant 0 : i32
    %c0_i32_1 = arith.constant 0 : i32
    return %c0_i32, %c0_i32_0 : i32, i32
  }
  func.func @transform_17(%arg0: i32, %arg1: i32) -> (i32, i32, i32) {
    %c0_i32 = arith.constant 0 : i32
    %c0_i32_0 = arith.constant 0 : i32
    return %arg0, %c0_i32, %arg1 : i32, i32, i32
  }
}

</mosaic_0001>

<llo_original>
// kernel: tpu_custom_call.1
$region0: #{tpu_custom_call.1}
  #allocation0 [shape = 'u32[]', space=smem, size = 0x4, offset = 0x4, fixed_abs, tag = 'smem constant byte address 0x4 - core index']
  #allocation1 [shape = 'u32[144,128]{1,0:T(1,128)}', space=vmem, size = 0x12000, scoped, tag = 'internal scratch']
  %s0 = inlined_call_operand.vmem [shape: f32[2,4,16], index: 0, kind: input, shape index: {}]
  %s1 = inlined_call_operand.vmem [shape: bf16[64,4], index: 1, kind: input, shape index: {}]
  %s2 = inlined_call_operand.vmem [shape: f32[64,1], index: 2, kind: input, shape index: {}]
  %s3 = inlined_call_operand.vmem [shape: bf16[128,64], index: 3, kind: input, shape index: {}]
  %s4 = inlined_call_operand.vmem [shape: f32[128,1], index: 4, kind: input, shape index: {}]
  %s5 = inlined_call_operand.vmem [shape: bf16[256,128], index: 5, kind: input, shape index: {}]
  %s6 = inlined_call_operand.vmem [shape: f32[256,1], index: 6, kind: input, shape index: {}]
  %s7 = inlined_call_operand.vmem [shape: bf16[128,256], index: 7, kind: input, shape index: {}]
  %s8 = inlined_call_operand.vmem [shape: f32[128,1], index: 8, kind: input, shape index: {}]
  %s9 = inlined_call_operand.vmem [shape: bf16[64,128], index: 9, kind: input, shape index: {}]
  %s10 = inlined_call_operand.vmem [shape: bf16[64,128], index: 10, kind: input, shape index: {}]
  %s11 = inlined_call_operand.vmem [shape: f32[64,1], index: 11, kind: input, shape index: {}]
  %s12 = inlined_call_operand.vmem [shape: bf16[64,64], index: 12, kind: input, shape index: {}]
  %s13 = inlined_call_operand.vmem [shape: bf16[64,64], index: 13, kind: input, shape index: {}]
  %s14 = inlined_call_operand.vmem [shape: f32[64,1], index: 14, kind: input, shape index: {}]
  %s15 = inlined_call_operand.vmem [shape: bf16[4,64], index: 15, kind: input, shape index: {}]
  %s16 = inlined_call_operand.vmem [shape: f32[4,1], index: 16, kind: input, shape index: {}]
  %s17 = inlined_call_operand.hbm [shape: f32[2,4,16], index: 17, kind: output, shape index: {}]
  %s18 = sld [smem:[#allocation0]]
  $region101: #{tpu_custom_call.1} parent=0
    _
  %s20 = ssub.s32 1, %s18
  %s21 = scalar_select 0, %s20, %s18
  $region1: #{tpu_custom_call.1} parent=0
    #allocation2 [shape = 'u8[4096]{0}', space=vmem, size = 0x1000, scoped, tag = 'output window, operand 0']
    #allocation3 [shape = 's32[2]{0}', space=sflag, size = 0x8, scoped, tag = 'scoped memory for tpu_custom_call.1']
    %22 = vsyncpa [#allocation3], 0
    %s23 = scalar_lea.sflag [#allocation3], 1
    %24 = vsyncpa %s23, 0
    loop: start=0, step=1, limit=4
    $region2: #{tpu_custom_call.1} parent=1 // loop_pre_header
      _
    $region3: #{tpu_custom_call.1} parent=1 // loop_header
      %s26 = sphi 0, %s30
      %p27 = scmp.ge.s32.totalorder %s26, 4
      %s33 = sphi 0, %s45
      %s34 = sphi 0, %s41
      %s35 = sphi 0, %s33
      %s36 = sphi 0, %s34
      %s37 = sphi 0, %s35
      %s38 = sphi 0, %s36
      %s50 = sphi 0, %s52
      %s53 = sphi 0, %s50
      %s54 = sphi 0, %s53
      %s70 = sphi 0, %s54
      %s74 = sphi 0, %s74
      %s76 = sphi 0, %s74
      %s77 = sphi 0, %s76
      %s91 = sphi 0, %s77
      %s95 = sphi 0, %s95
      %s97 = sphi 0, %s95
      %s98 = sphi 0, %s97
      %s112 = sphi 0, %s98
      %s116 = sphi 0, %s116
      %s118 = sphi 0, %s116
      %s119 = sphi 0, %s118
      %s133 = sphi 0, %s119
      %s137 = sphi 0, %s137
      %s139 = sphi 0, %s137
      %s140 = sphi 0, %s139
      %s154 = sphi 0, %s140
      %s158 = sphi 0, %s158
      %s160 = sphi 0, %s158
      %s161 = sphi 0, %s160
      %s175 = sphi 0, %s161
      %s179 = sphi 0, %s179
      %s181 = sphi 0, %s179
      %s182 = sphi 0, %s181
      %s196 = sphi 0, %s182
      %s200 = sphi 0, %s200
      %s202 = sphi 0, %s200
      %s203 = sphi 0, %s202
      %s217 = sphi 0, %s203
      %s221 = sphi 0, %s221
      %s223 = sphi 0, %s221
      %s224 = sphi 0, %s223
      %s238 = sphi 0, %s224
      %s242 = sphi 0, %s242
      %s244 = sphi 0, %s242
      %s245 = sphi 0, %s244
      %s259 = sphi 0, %s245
      %s263 = sphi 0, %s263
      %s265 = sphi 0, %s263
      %s266 = sphi 0, %s265
      %s280 = sphi 0, %s266
      %s284 = sphi 0, %s284
      %s286 = sphi 0, %s284
      %s287 = sphi 0, %s286
      %s301 = sphi 0, %s287
      %s305 = sphi 0, %s305
      %s307 = sphi 0, %s305
      %s308 = sphi 0, %s307
      %s322 = sphi 0, %s308
      %s326 = sphi 0, %s326
      %s328 = sphi 0, %s326
      %s329 = sphi 0, %s328
      %s343 = sphi 0, %s329
      %s347 = sphi 0, %s347
      %s349 = sphi 0, %s347
      %s350 = sphi 0, %s349
      %s364 = sphi 0, %s350
      %s368 = sphi 0, %s368
      %s370 = sphi 0, %s368
      %s371 = sphi 0, %s370
      %s385 = sphi 0, %s371
      %s389 = sphi 0, %s389
      %s391 = sphi 0, %s389
      %s392 = sphi 0, %s391
      %s406 = sphi 0, %s392
      %s414 = sphi 0, %s416
      %s417 = sphi 0, %s414
      %s418 = sphi 0, %s417
      %s434 = sphi 0, %s418
    $region4: #{tpu_custom_call.1} parent=1 // loop_header_branch
      %29 = sbr.rel (%p27) target = $region8
    $region5: #{tpu_custom_call.1} parent=1 // loop_body
      %s31 = ssub.s32 %s26, 1
      %s32 = ssub.s32 %s26, 2
      %s39 = sadd.s32 1, %s34
      %p40 = scmp.ge.s32.totalorder %s39, 1
      %s41 = scalar_select %p40, 0, %s39
      %s42 = sadd.s32 1, %s33
      %s43 = scalar_select %p40, %s42, %s33
      %p44 = scmp.ge.s32.totalorder %s43, 2
      %s45 = scalar_select %p44, 0, %s43
      %s46 = ssub.s32 %s33, %s45
      %s47 = ssub.s32 %s34, %s41
      %s48 = sor.u32 %s46, %s47
      %p49 = scmp.eq.s32.totalorder %s48, 0
      %s51 = sadd.s32 %s50, 1
      %s52 = scalar_select %p49, %s50, %s51
      %p55 = pneg %p49
      %p56 = scmp.eq.s32.totalorder %s26, 1
      %p57 = por %p55, %p56
      %p58 = scmp.ne.s32.totalorder %s50, %s53
      %p59 = scmp.eq.s32.totalorder %s26, 0
      %p60 = por %p58, %p59
      %p61 = scmp.ne.s32.totalorder %s50, %s53
      %p62 = scmp.eq.s32.totalorder %s31, 1
      %p63 = por %p61, %p62
      %p64 = scmp.ne.s32.totalorder %s53, %s54
      %p65 = scmp.eq.s32.totalorder %s31, 0
      %p66 = por %p64, %p65
      %p67 = scmp.ne.s32.totalorder %s53, %s54
      %p68 = scmp.eq.s32.totalorder %s32, 1
      %p69 = por %p67, %p68
      %p71 = scmp.ne.s32.totalorder %s54, %s70
      %p72 = scmp.eq.s32.totalorder %s32, 0
      %p73 = por %p71, %p72
      %s75 = sadd.s32 %s74, 1
      %p78 = scmp.eq.s32.totalorder %s26, 1
      %p79 = scmp.ne.s32.totalorder %s74, %s76
      %p80 = scmp.eq.s32.totalorder %s26, 0
      %p81 = por %p79, %p80
      %p82 = scmp.ne.s32.totalorder %s74, %s76
      %p83 = scmp.eq.s32.totalorder %s31, 1
      %p84 = por %p82, %p83
      %p85 = scmp.ne.s32.totalorder %s76, %s77
      %p86 = scmp.eq.s32.totalorder %s31, 0
      %p87 = por %p85, %p86
      %p88 = scmp.ne.s32.totalorder %s76, %s77
      %p89 = scmp.eq.s32.totalorder %s32, 1
      %p90 = por %p88, %p89
      %p92 = scmp.ne.s32.totalorder %s77, %s91
      %p93 = scmp.eq.s32.totalorder %s32, 0
      %p94 = por %p92, %p93
      %s96 = sadd.s32 %s95, 1
      %p99 = scmp.eq.s32.totalorder %s26, 1
      %p100 = scmp.ne.s32.totalorder %s95, %s97
      %p101 = scmp.eq.s32.totalorder %s26, 0
      %p102 = por %p100, %p101
      %p103 = scmp.ne.s32.totalorder %s95, %s97
      %p104 = scmp.eq.s32.totalorder %s31, 1
      %p105 = por %p103, %p104
      %p106 = scmp.ne.s32.totalorder %s97, %s98
      %p107 = scmp.eq.s32.totalorder %s31, 0
      %p108 = por %p106, %p107
      %p109 = scmp.ne.s32.totalorder %s97, %s98
      %p110 = scmp.eq.s32.totalorder %s32, 1
      %p111 = por %p109, %p110
      %p113 = scmp.ne.s32.totalorder %s98, %s112
      %p114 = scmp.eq.s32.totalorder %s32, 0
      %p115 = por %p113, %p114
      %s117 = sadd.s32 %s116, 1
      %p120 = scmp.eq.s32.totalorder %s26, 1
      %p121 = scmp.ne.s32.totalorder %s116, %s118
      %p122 = scmp.eq.s32.totalorder %s26, 0
      %p123 = por %p121, %p122
      %p124 = scmp.ne.s32.totalorder %s116, %s118
      %p125 = scmp.eq.s32.totalorder %s31, 1
      %p126 = por %p124, %p125
      %p127 = scmp.ne.s32.totalorder %s118, %s119
      %p128 = scmp.eq.s32.totalorder %s31, 0
      %p129 = por %p127, %p128
      %p130 = scmp.ne.s32.totalorder %s118, %s119
      %p131 = scmp.eq.s32.totalorder %s32, 1
      %p132 = por %p130, %p131
      %p134 = scmp.ne.s32.totalorder %s119, %s133
      %p135 = scmp.eq.s32.totalorder %s32, 0
      %p136 = por %p134, %p135
      %s138 = sadd.s32 %s137, 1
      %p141 = scmp.eq.s32.totalorder %s26, 1
      %p142 = scmp.ne.s32.totalorder %s137, %s139
      %p143 = scmp.eq.s32.totalorder %s26, 0
      %p144 = por %p142, %p143
      %p145 = scmp.ne.s32.totalorder %s137, %s139
      %p146 = scmp.eq.s32.totalorder %s31, 1
      %p147 = por %p145, %p146
      %p148 = scmp.ne.s32.totalorder %s139, %s140
      %p149 = scmp.eq.s32.totalorder %s31, 0
      %p150 = por %p148, %p149
      %p151 = scmp.ne.s32.totalorder %s139, %s140
      %p152 = scmp.eq.s32.totalorder %s32, 1
      %p153 = por %p151, %p152
      %p155 = scmp.ne.s32.totalorder %s140, %s154
      %p156 = scmp.eq.s32.totalorder %s32, 0
      %p157 = por %p155, %p156
      %s159 = sadd.s32 %s158, 1
      %p162 = scmp.eq.s32.totalorder %s26, 1
      %p163 = scmp.ne.s32.totalorder %s158, %s160
      %p164 = scmp.eq.s32.totalorder %s26, 0
      %p165 = por %p163, %p164
      %p166 = scmp.ne.s32.totalorder %s158, %s160
      %p167 = scmp.eq.s32.totalorder %s31, 1
      %p168 = por %p166, %p167
      %p169 = scmp.ne.s32.totalorder %s160, %s161
      %p170 = scmp.eq.s32.totalorder %s31, 0
      %p171 = por %p169, %p170
      %p172 = scmp.ne.s32.totalorder %s160, %s161
      %p173 = scmp.eq.s32.totalorder %s32, 1
      %p174 = por %p172, %p173
      %p176 = scmp.ne.s32.totalorder %s161, %s175
      %p177 = scmp.eq.s32.totalorder %s32, 0
      %p178 = por %p176, %p177
      %s180 = sadd.s32 %s179, 1
      %p183 = scmp.eq.s32.totalorder %s26, 1
      %p184 = scmp.ne.s32.totalorder %s179, %s181
      %p185 = scmp.eq.s32.totalorder %s26, 0
      %p186 = por %p184, %p185
      %p187 = scmp.ne.s32.totalorder %s179, %s181
      %p188 = scmp.eq.s32.totalorder %s31, 1
      %p189 = por %p187, %p188
      %p190 = scmp.ne.s32.totalorder %s181, %s182
      %p191 = scmp.eq.s32.totalorder %s31, 0
      %p192 = por %p190, %p191
      %p193 = scmp.ne.s32.totalorder %s181, %s182
      %p194 = scmp.eq.s32.totalorder %s32, 1
      %p195 = por %p193, %p194
      %p197 = scmp.ne.s32.totalorder %s182, %s196
      %p198 = scmp.eq.s32.totalorder %s32, 0
      %p199 = por %p197, %p198
      %s201 = sadd.s32 %s200, 1
      %p204 = scmp.eq.s32.totalorder %s26, 1
      %p205 = scmp.ne.s32.totalorder %s200, %s202
      %p206 = scmp.eq.s32.totalorder %s26, 0
      %p207 = por %p205, %p206
      %p208 = scmp.ne.s32.totalorder %s200, %s202
      %p209 = scmp.eq.s32.totalorder %s31, 1
      %p210 = por %p208, %p209
      %p211 = scmp.ne.s32.totalorder %s202, %s203
      %p212 = scmp.eq.s32.totalorder %s31, 0
      %p213 = por %p211, %p212
      %p214 = scmp.ne.s32.totalorder %s202, %s203
      %p215 = scmp.eq.s32.totalorder %s32, 1
      %p216 = por %p214, %p215
      %p218 = scmp.ne.s32.totalorder %s203, %s217
      %p219 = scmp.eq.s32.totalorder %s32, 0
      %p220 = por %p218, %p219
      %s222 = sadd.s32 %s221, 1
      %p225 = scmp.eq.s32.totalorder %s26, 1
      %p226 = scmp.ne.s32.totalorder %s221, %s223
      %p227 = scmp.eq.s32.totalorder %s26, 0
      %p228 = por %p226, %p227
      %p229 = scmp.ne.s32.totalorder %s221, %s223
      %p230 = scmp.eq.s32.totalorder %s31, 1
      %p231 = por %p229, %p230
      %p232 = scmp.ne.s32.totalorder %s223, %s224
      %p233 = scmp.eq.s32.totalorder %s31, 0
      %p234 = por %p232, %p233
      %p235 = scmp.ne.s32.totalorder %s223, %s224
      %p236 = scmp.eq.s32.totalorder %s32, 1
      %p237 = por %p235, %p236
      %p239 = scmp.ne.s32.totalorder %s224, %s238
      %p240 = scmp.eq.s32.totalorder %s32, 0
      %p241 = por %p239, %p240
      %s243 = sadd.s32 %s242, 1
      %p246 = scmp.eq.s32.totalorder %s26, 1
      %p247 = scmp.ne.s32.totalorder %s242, %s244
      %p248 = scmp.eq.s32.totalorder %s26, 0
      %p249 = por %p247, %p248
      %p250 = scmp.ne.s32.totalorder %s242, %s244
      %p251 = scmp.eq.s32.totalorder %s31, 1
      %p252 = por %p250, %p251
      %p253 = scmp.ne.s32.totalorder %s244, %s245
      %p254 = scmp.eq.s32.totalorder %s31, 0
      %p255 = por %p253, %p254
      %p256 = scmp.ne.s32.totalorder %s244, %s245
      %p257 = scmp.eq.s32.totalorder %s32, 1
      %p258 = por %p256, %p257
      %p260 = scmp.ne.s32.totalorder %s245, %s259
      %p261 = scmp.eq.s32.totalorder %s32, 0
      %p262 = por %p260, %p261
      %s264 = sadd.s32 %s263, 1
      %p267 = scmp.eq.s32.totalorder %s26, 1
      %p268 = scmp.ne.s32.totalorder %s263, %s265
      %p269 = scmp.eq.s32.totalorder %s26, 0
      %p270 = por %p268, %p269
      %p271 = scmp.ne.s32.totalorder %s263, %s265
      %p272 = scmp.eq.s32.totalorder %s31, 1
      %p273 = por %p271, %p272
      %p274 = scmp.ne.s32.totalorder %s265, %s266
      %p275 = scmp.eq.s32.totalorder %s31, 0
      %p276 = por %p274, %p275
      %p277 = scmp.ne.s32.totalorder %s265, %s266
      %p278 = scmp.eq.s32.totalorder %s32, 1
      %p279 = por %p277, %p278
      %p281 = scmp.ne.s32.totalorder %s266, %s280
      %p282 = scmp.eq.s32.totalorder %s32, 0
      %p283 = por %p281, %p282
      %s285 = sadd.s32 %s284, 1
      %p288 = scmp.eq.s32.totalorder %s26, 1
      %p289 = scmp.ne.s32.totalorder %s284, %s286
      %p290 = scmp.eq.s32.totalorder %s26, 0
      %p291 = por %p289, %p290
      %p292 = scmp.ne.s32.totalorder %s284, %s286
      %p293 = scmp.eq.s32.totalorder %s31, 1
      %p294 = por %p292, %p293
      %p295 = scmp.ne.s32.totalorder %s286, %s287
      %p296 = scmp.eq.s32.totalorder %s31, 0
      %p297 = por %p295, %p296
      %p298 = scmp.ne.s32.totalorder %s286, %s287
      %p299 = scmp.eq.s32.totalorder %s32, 1
      %p300 = por %p298, %p299
      %p302 = scmp.ne.s32.totalorder %s287, %s301
      %p303 = scmp.eq.s32.totalorder %s32, 0
      %p304 = por %p302, %p303
      %s306 = sadd.s32 %s305, 1
      %p309 = scmp.eq.s32.totalorder %s26, 1
      %p310 = scmp.ne.s32.totalorder %s305, %s307
      %p311 = scmp.eq.s32.totalorder %s26, 0
      %p312 = por %p310, %p311
      %p313 = scmp.ne.s32.totalorder %s305, %s307
      %p314 = scmp.eq.s32.totalorder %s31, 1
      %p315 = por %p313, %p314
      %p316 = scmp.ne.s32.totalorder %s307, %s308
      %p317 = scmp.eq.s32.totalorder %s31, 0
      %p318 = por %p316, %p317
      %p319 = scmp.ne.s32.totalorder %s307, %s308
      %p320 = scmp.eq.s32.totalorder %s32, 1
      %p321 = por %p319, %p320
      %p323 = scmp.ne.s32.totalorder %s308, %s322
      %p324 = scmp.eq.s32.totalorder %s32, 0
      %p325 = por %p323, %p324
      %s327 = sadd.s32 %s326, 1
      %p330 = scmp.eq.s32.totalorder %s26, 1
      %p331 = scmp.ne.s32.totalorder %s326, %s328
      %p332 = scmp.eq.s32.totalorder %s26, 0
      %p333 = por %p331, %p332
      %p334 = scmp.ne.s32.totalorder %s326, %s328
      %p335 = scmp.eq.s32.totalorder %s31, 1
      %p336 = por %p334, %p335
      %p337 = scmp.ne.s32.totalorder %s328, %s329
      %p338 = scmp.eq.s32.totalorder %s31, 0
      %p339 = por %p337, %p338
      %p340 = scmp.ne.s32.totalorder %s328, %s329
      %p341 = scmp.eq.s32.totalorder %s32, 1
      %p342 = por %p340, %p341
      %p344 = scmp.ne.s32.totalorder %s329, %s343
      %p345 = scmp.eq.s32.totalorder %s32, 0
      %p346 = por %p344, %p345
      %s348 = sadd.s32 %s347, 1
      %p351 = scmp.eq.s32.totalorder %s26, 1
      %p352 = scmp.ne.s32.totalorder %s347, %s349
      %p353 = scmp.eq.s32.totalorder %s26, 0
      %p354 = por %p352, %p353
      %p355 = scmp.ne.s32.totalorder %s347, %s349
      %p356 = scmp.eq.s32.totalorder %s31, 1
      %p357 = por %p355, %p356
      %p358 = scmp.ne.s32.totalorder %s349, %s350
      %p359 = scmp.eq.s32.totalorder %s31, 0
      %p360 = por %p358, %p359
      %p361 = scmp.ne.s32.totalorder %s349, %s350
      %p362 = scmp.eq.s32.totalorder %s32, 1
      %p363 = por %p361, %p362
      %p365 = scmp.ne.s32.totalorder %s350, %s364
      %p366 = scmp.eq.s32.totalorder %s32, 0
      %p367 = por %p365, %p366
      %s369 = sadd.s32 %s368, 1
      %p372 = scmp.eq.s32.totalorder %s26, 1
      %p373 = scmp.ne.s32.totalorder %s368, %s370
      %p374 = scmp.eq.s32.totalorder %s26, 0
      %p375 = por %p373, %p374
      %p376 = scmp.ne.s32.totalorder %s368, %s370
      %p377 = scmp.eq.s32.totalorder %s31, 1
      %p378 = por %p376, %p377
      %p379 = scmp.ne.s32.totalorder %s370, %s371
      %p380 = scmp.eq.s32.totalorder %s31, 0
      %p381 = por %p379, %p380
      %p382 = scmp.ne.s32.totalorder %s370, %s371
      %p383 = scmp.eq.s32.totalorder %s32, 1
      %p384 = por %p382, %p383
      %p386 = scmp.ne.s32.totalorder %s371, %s385
      %p387 = scmp.eq.s32.totalorder %s32, 0
      %p388 = por %p386, %p387
      %s390 = sadd.s32 %s389, 1
      %p393 = scmp.eq.s32.totalorder %s26, 1
      %p394 = scmp.ne.s32.totalorder %s389, %s391
      %p395 = scmp.eq.s32.totalorder %s26, 0
      %p396 = por %p394, %p395
      %p397 = scmp.ne.s32.totalorder %s389, %s391
      %p398 = scmp.eq.s32.totalorder %s31, 1
      %p399 = por %p397, %p398
      %p400 = scmp.ne.s32.totalorder %s391, %s392
      %p401 = scmp.eq.s32.totalorder %s31, 0
      %p402 = por %p400, %p401
      %p403 = scmp.ne.s32.totalorder %s391, %s392
      %p404 = scmp.eq.s32.totalorder %s32, 1
      %p405 = por %p403, %p404
      %p407 = scmp.ne.s32.totalorder %s392, %s406
      %p408 = scmp.eq.s32.totalorder %s32, 0
      %p409 = por %p407, %p408
      %s410 = ssub.s32 %s33, %s45
      %s411 = ssub.s32 %s34, %s41
      %s412 = sor.u32 %s410, %s411
      %p413 = scmp.eq.s32.totalorder %s412, 0
      %s415 = sadd.s32 %s414, 1
      %s416 = scalar_select %p413, %s414, %s415
      %p419 = pneg %p413
      %p420 = scmp.eq.s32.totalorder %s26, 1
      %p421 = por %p419, %p420
      %p422 = scmp.ne.s32.totalorder %s414, %s417
      %p423 = scmp.eq.s32.totalorder %s26, 0
      %p424 = por %p422, %p423
      %p425 = scmp.ne.s32.totalorder %s414, %s417
      %p426 = scmp.eq.s32.totalorder %s31, 1
      %p427 = por %p425, %p426
      %p428 = scmp.ne.s32.totalorder %s417, %s418
      %p429 = scmp.eq.s32.totalorder %s31, 0
      %p430 = por %p428, %p429
      %p431 = scmp.ne.s32.totalorder %s417, %s418
      %p432 = scmp.eq.s32.totalorder %s32, 1
      %p433 = por %p431, %p432
      %p435 = scmp.ne.s32.totalorder %s418, %s434
      %p436 = scmp.eq.s32.totalorder %s32, 0
      %p437 = por %p435, %p436
      %p438 = scmp.le.s32.totalorder 1, %s26
      %p439 = scmp.lt.s32.totalorder %s26, 3
      %p440 = pnand %p438, %p439
      %p441 = pneg %p440
      // Predicated region
      $region9: #{tpu_custom_call.1} parent=5 // pred_check
        _
      $region10: #{tpu_custom_call.1} parent=5 // pred_check_branch
        %443 = sbr.rel (%p440) target = $region12
      $region11: #{tpu_custom_call.1} parent=5 // pred_region
        %s444 = ssub.s32 %s26, 1
        // Predicated region
        $region13: #{tpu_custom_call.1} parent=11 // pred_check
          %p445 = pneg %p87
        $region14: #{tpu_custom_call.1} parent=11 // pred_check_branch
          %447 = sbr.rel (%p445) target = $region16
        $region15: #{tpu_custom_call.1} parent=11 // pred_region
          _
        $region16: #{tpu_custom_call.1} parent=11 // pred_fallthru
          _
        // Predicated region
        $region17: #{tpu_custom_call.1} parent=11 // pred_check
          %p448 = pneg %p108
        $region18: #{tpu_custom_call.1} parent=11 // pred_check_branch
          %450 = sbr.rel (%p448) target = $region20
        $region19: #{tpu_custom_call.1} parent=11 // pred_region
          _
        $region20: #{tpu_custom_call.1} parent=11 // pred_fallthru
          _
        // Predicated region
        $region21: #{tpu_custom_call.1} parent=11 // pred_check
          %p451 = pneg %p129
        $region22: #{tpu_custom_call.1} parent=11 // pred_check_branch
          %453 = sbr.rel (%p451) target = $region24
        $region23: #{tpu_custom_call.1} parent=11 // pred_region
          _
        $region24: #{tpu_custom_call.1} parent=11 // pred_fallthru
          _
        // Predicated region
        $region25: #{tpu_custom_call.1} parent=11 // pred_check
          %p454 = pneg %p150
        $region26: #{tpu_custom_call.1} parent=11 // pred_check_branch
          %456 = sbr.rel (%p454) target = $region28
        $region27: #{tpu_custom_call.1} parent=11 // pred_region
          _
        $region28: #{tpu_custom_call.1} parent=11 // pred_fallthru
          _
        // Predicated region
        $region29: #{tpu_custom_call.1} parent=11 // pred_check
          %p457 = pneg %p171
        $region30: #{tpu_custom_call.1} parent=11 // pred_check_branch
          %459 = sbr.rel (%p457) target = $region32
        $region31: #{tpu_custom_call.1} parent=11 // pred_region
          _
        $region32: #{tpu_custom_call.1} parent=11 // pred_fallthru
          _
        // Predicated region
        $region33: #{tpu_custom_call.1} parent=11 // pred_check
          %p460 = pneg %p192
        $region34: #{tpu_custom_call.1} parent=11 // pred_check_branch
          %462 = sbr.rel (%p460) target = $region36
        $region35: #{tpu_custom_call.1} parent=11 // pred_region
          _
        $region36: #{tpu_custom_call.1} parent=11 // pred_fallthru
          _
        // Predicated region
        $region37: #{tpu_custom_call.1} parent=11 // pred_check
          %p463 = pneg %p213
        $region38: #{tpu_custom_call.1} parent=11 // pred_check_branch
          %465 = sbr.rel (%p463) target = $region40
        $region39: #{tpu_custom_call.1} parent=11 // pred_region
          _
        $region40: #{tpu_custom_call.1} parent=11 // pred_fallthru
          _
        // Predicated region
        $region41: #{tpu_custom_call.1} parent=11 // pred_check
          %p466 = pneg %p234
        $region42: #{tpu_custom_call.1} parent=11 // pred_check_branch
          %468 = sbr.rel (%p466) target = $region44
        $region43: #{tpu_custom_call.1} parent=11 // pred_region
          _
        $region44: #{tpu_custom_call.1} parent=11 // pred_fallthru
          _
        // Predicated region
        $region45: #{tpu_custom_call.1} parent=11 // pred_check
          %p469 = pneg %p255
        $region46: #{tpu_custom_call.1} parent=11 // pred_check_branch
          %471 = sbr.rel (%p469) target = $region48
        $region47: #{tpu_custom_call.1} parent=11 // pred_region
          _
        $region48: #{tpu_custom_call.1} parent=11 // pred_fallthru
          _
        // Predicated region
        $region49: #{tpu_custom_call.1} parent=11 // pred_check
          %p472 = pneg %p276
        $region50: #{tpu_custom_call.1} parent=11 // pred_check_branch
          %474 = sbr.rel (%p472) target = $region52
        $region51: #{tpu_custom_call.1} parent=11 // pred_region
          _
        $region52: #{tpu_custom_call.1} parent=11 // pred_fallthru
          _
        // Predicated region
        $region53: #{tpu_custom_call.1} parent=11 // pred_check
          %p475 = pneg %p297
        $region54: #{tpu_custom_call.1} parent=11 // pred_check_branch
          %477 = sbr.rel (%p475) target = $region56
        $region55: #{tpu_custom_call.1} parent=11 // pred_region
          _
        $region56: #{tpu_custom_call.1} parent=11 // pred_fallthru
          _
        // Predicated region
        $region57: #{tpu_custom_call.1} parent=11 // pred_check
          %p478 = pneg %p318
        $region58: #{tpu_custom_call.1} parent=11 // pred_check_branch
          %480 = sbr.rel (%p478) target = $region60
        $region59: #{tpu_custom_call.1} parent=11 // pred_region
          _
        $region60: #{tpu_custom_call.1} parent=11 // pred_fallthru
          _
        // Predicated region
        $region61: #{tpu_custom_call.1} parent=11 // pred_check
          %p481 = pneg %p339
        $region62: #{tpu_custom_call.1} parent=11 // pred_check_branch
          %483 = sbr.rel (%p481) target = $region64
        $region63: #{tpu_custom_call.1} parent=11 // pred_region
          _
        $region64: #{tpu_custom_call.1} parent=11 // pred_fallthru
          _
        // Predicated region
        $region65: #{tpu_custom_call.1} parent=11 // pred_check
          %p484 = pneg %p360
        $region66: #{tpu_custom_call.1} parent=11 // pred_check_branch
          %486 = sbr.rel (%p484) target = $region68
        $region67: #{tpu_custom_call.1} parent=11 // pred_region
          _
        $region68: #{tpu_custom_call.1} parent=11 // pred_fallthru
          _
        // Predicated region
        $region69: #{tpu_custom_call.1} parent=11 // pred_check
          %p487 = pneg %p381
        $region70: #{tpu_custom_call.1} parent=11 // pred_check_branch
          %489 = sbr.rel (%p487) target = $region72
        $region71: #{tpu_custom_call.1} parent=11 // pred_region
          _
        $region72: #{tpu_custom_call.1} parent=11 // pred_fallthru
          _
        // Predicated region
        $region73: #{tpu_custom_call.1} parent=11 // pred_check
          %p490 = pneg %p402
        $region74: #{tpu_custom_call.1} parent=11 // pred_check_branch
          %492 = sbr.rel (%p490) target = $region76
        $region75: #{tpu_custom_call.1} parent=11 // pred_region
          _
        $region76: #{tpu_custom_call.1} parent=11 // pred_fallthru
          _
      $region12: #{tpu_custom_call.1} parent=5 // pred_fallthru
        _
      %p493 = scmp.lt.s32.totalorder %s26, 2
      // Predicated region
      $region77: #{tpu_custom_call.1} parent=5 // pred_check
        %p494 = pneg %p493
      $region78: #{tpu_custom_call.1} parent=5 // pred_check_branch
        %496 = sbr.rel (%p494) target = $region80
      $region79: #{tpu_custom_call.1} parent=5 // pred_region
        // Predicated region
        $region81: #{tpu_custom_call.1} parent=79 // pred_check
          %p497 = pneg %p60
        $region82: #{tpu_custom_call.1} parent=79 // pred_check_branch
          %499 = sbr.rel (%p497) target = $region84
        $region83: #{tpu_custom_call.1} parent=79 // pred_region
          %p500 = scmp.lt.s32.totalorder %s33, 1
          %s501 = scalar_select %p500, %s33, 1
          %p502 = scmp.lt.s32.totalorder %s34, 0
          %s503 = scalar_select %p502, %s34, 0
          %s504 = sadd.s32 %s503, %s501
          %s505 = smul.addr %s504, 4
          %s506 = scalar_lea.vmem %s0, %s505
        $region84: #{tpu_custom_call.1} parent=79 // pred_fallthru
          _
      $region80: #{tpu_custom_call.1} parent=5 // pred_fallthru
        _
      %p507 = scmp.le.s32.totalorder 1, %s26
      %p508 = scmp.lt.s32.totalorder %s26, 3
      %p509 = pnand %p507, %p508
      %p510 = pneg %p509
      // Predicated region
      $region85: #{tpu_custom_call.1} parent=5 // pred_check
        _
      $region86: #{tpu_custom_call.1} parent=5 // pred_check_branch
        %512 = sbr.rel (%p509) target = $region88
      $region87: #{tpu_custom_call.1} parent=5 // pred_region
        %s513 = ssub.s32 %s26, 1
        %p514 = scmp.lt.s32.totalorder %s35, 1
        %s515 = scalar_select %p514, %s35, 1
        %p516 = scmp.lt.s32.totalorder %s36, 0
        %s517 = scalar_select %p516, %s36, 0
        %s518 = sadd.s32 %s517, %s515
        %s519 = smul.addr %s518, 4
        %s520 = scalar_lea.vmem %s0, %s519
        %p521 = pneg %p66
        %p522 = pneg %p63
        %p523 = pneg %p87
        %p524 = pneg %p84
        %p525 = pneg %p108
        %p526 = pneg %p105
        %p527 = pneg %p129
        %p528 = pneg %p126
        %p529 = pneg %p150
        %p530 = pneg %p147
        %p531 = pneg %p171
        %p532 = pneg %p168
        %p533 = pneg %p192
        %p534 = pneg %p189
        %p535 = pneg %p213
        %p536 = pneg %p210
        %p537 = pneg %p234
        %p538 = pneg %p231
        %p539 = pneg %p255
        %p540 = pneg %p252
        %p541 = pneg %p276
        %p542 = pneg %p273
        %p543 = pneg %p297
        %p544 = pneg %p294
        %p545 = pneg %p318
        %p546 = pneg %p315
        %p547 = pneg %p339
        %p548 = pneg %p336
        %p549 = pneg %p360
        %p550 = pneg %p357
        %p551 = pneg %p381
        %p552 = pneg %p378
        %p553 = pneg %p402
        %p554 = pneg %p399
        %p555 = pneg %p430
        %p556 = pneg %p427
        %s557 = sand.u32 %s417, 1
        %s558 = scalar_lea.sflag [#allocation3], %s557
        %s559 = sand.u32 %s417, 1
        %s560 = smul.addr %s559, 4
        %s561 = scalar_lea.vmem [#allocation2], %s560
        %p562 = scmp.lt.s32.totalorder %s35, 1
        %s563 = scalar_select %p562, %s35, 1
        %p564 = scmp.lt.s32.totalorder %s36, 0
        %s565 = scalar_select %p564, %s36, 0
        %s566 = sadd.s32 %s565, %s563
        %s567 = smul.addr %s566, 4
        %s568 = scalar_lea.vmem %s0, %s567
        %v570 = vld [vmem:[%s568] sm:$0xf]
        %v571 = vpack.c.bf16 %v570, %v570
        %v572 = vld [vmem:[%s1] sm:$0xf]
        %v573 = vld [vmem:[%s1 + $0x4] sm:$0xf]
        %v574 = vld [vmem:[%s1 + $0x8] sm:$0xf]
        %v575 = vld [vmem:[%s1 + $0xc] sm:$0xf]
        %v576 = vld [vmem:[%s1 + $0x10] sm:$0xf]
        %v577 = vld [vmem:[%s1 + $0x14] sm:$0xf]
        %v578 = vld [vmem:[%s1 + $0x18] sm:$0xf]
        %v579 = vld [vmem:[%s1 + $0x1c] sm:$0xf]
        %v580 = vld [vmem:[%s2] sm:$0xff]
        %v581 = vld [vmem:[%s2 + $0x8] sm:$0xff]
        %v582 = vld [vmem:[%s2 + $0x10] sm:$0xff]
        %v583 = vld [vmem:[%s2 + $0x18] sm:$0xff]
        %v584 = vld [vmem:[%s2 + $0x20] sm:$0xff]
        %v585 = vld [vmem:[%s2 + $0x28] sm:$0xff]
        %v586 = vld [vmem:[%s2 + $0x30] sm:$0xff]
        %v587 = vld [vmem:[%s2 + $0x38] sm:$0xff]
        %589 = vset.pattern.permute.xlu0 0
        %590 = vperm.xlu0 %589, %v580
        %v591 = vpop.permute.xlu0 %590
        %594 = vset.pattern.permute.xlu0 0
        %595 = vperm.xlu0 %594, %v581
        %v596 = vpop.permute.xlu0 %595
        %599 = vset.pattern.permute.xlu0 0
        %600 = vperm.xlu0 %599, %v582
        %v601 = vpop.permute.xlu0 %600
        %604 = vset.pattern.permute.xlu0 0
        %605 = vperm.xlu0 %604, %v583
        %v606 = vpop.permute.xlu0 %605
        %609 = vset.pattern.permute.xlu0 0
        %610 = vperm.xlu0 %609, %v584
        %v611 = vpop.permute.xlu0 %610
        %614 = vset.pattern.permute.xlu0 0
        %615 = vperm.xlu0 %614, %v585
        %v616 = vpop.permute.xlu0 %615
        %619 = vset.pattern.permute.xlu0 0
        %620 = vperm.xlu0 %619, %v586
        %v621 = vpop.permute.xlu0 %620
        %624 = vset.pattern.permute.xlu0 0
        %625 = vperm.xlu0 %624, %v587
        %v626 = vpop.permute.xlu0 %625
        %v636 = vunpack.c.l.b16 %v572
        %v637 = vunpack.c.l.b16 %v573
        %v638 = vunpack.c.l.b16 %v574
        %v639 = vunpack.c.l.b16 %v575
        %v640 = vunpack.c.l.b16 %v576
        %v641 = vunpack.c.l.b16 %v577
        %v642 = vunpack.c.l.b16 %v578
        %v643 = vunpack.c.l.b16 %v579
        %v644 = vpack.c.b16 %v637, %v636
        %v645 = vpack.c.b16 %v639, %v638
        %v646 = vpack.c.b16 %v641, %v640
        %v647 = vpack.c.b16 %v643, %v642
        %vm648 = vcmask 31744
        %v650 = vsel %vm648, %v644, 0
        %v653 = vsel %vm648, %v645, 0
        %v656 = vsel %vm648, %v646, 0
        %v659 = vsel %vm648, %v647, 0
        %vm661 = vcmask 1041408
        %v663 = vsel %vm661, %v571, 0
        %665 = vmatprep.subr.bf16.mxu0 0
        %666 = vmatpush1.bf16.msra.mxu0 %v663
        %667 = vmatprep.subr.bf16.mxu0 0
        %668 = vmatpush1.bf16.msra.mxu0 0
        %669 = vmatprep.subr.bf16.mxu0 0
        %670 = vmatpush1.bf16.msra.mxu0 0
        %671 = vmatprep.subr.bf16.mxu0 0
        %672 = vmatpush1.bf16.msra.mxu0 0
        %673 = vmatprep.subr.bf16.mxu0 0
        %674 = vmatpush1.bf16.msra.mxu0 0
        %675 = vmatprep.subr.bf16.mxu0 0
        %676 = vmatpush1.bf16.msra.mxu0 0
        %677 = vmatprep.subr.bf16.mxu0 0
        %678 = vmatpush1.bf16.msra.mxu0 0
        %679 = vmatprep.subr.bf16.mxu0 0
        %680 = vmatpush1.bf16.msra.mxu0 0
        %681 = vmatprep.subr.bf16.mxu0 0
        %682 = vmatpush1.bf16.msra.mxu0 0
        %683 = vmatprep.subr.bf16.mxu0 0
        %684 = vmatpush1.bf16.msra.mxu0 0
        %685 = vmatprep.subr.bf16.mxu0 0
        %686 = vmatpush1.bf16.msra.mxu0 0
        %687 = vmatprep.subr.bf16.mxu0 0
        %688 = vmatpush1.bf16.msra.mxu0 0
        %689 = vmatprep.subr.bf16.mxu0 0
        %690 = vmatpush1.bf16.msra.mxu0 0
        %691 = vmatprep.subr.bf16.mxu0 0
        %692 = vmatpush1.bf16.msra.mxu0 0
        %693 = vmatprep.subr.bf16.mxu0 0
        %694 = vmatpush1.bf16.msra.mxu0 0
        %695 = vmatprep.subr.bf16.mxu0 0
        %696 = vmatpush1.bf16.msra.mxu0 0
        %697 = vmatprep.mubr.bf16.mxu0 0
        %698 = vmatmul.mubr.bf16.gmra.mrb[0].mxu0 %v650
        %v699 = vpop.f32.mrb[0].mxu0
        %v700 = vadd.f32 %v591, %v699
        %v701 = vpop.f32.mrb[0].mxu0
        %v702 = vpop.f32.mrb[0].mxu0
        %v703 = vadd.f32 %v596, %v702
        %v704 = vpop.f32.mrb[0].mxu0
        %705 = vmatprep.mubr.bf16.mxu0 0
        %706 = vmatmul.mubr.bf16.gmra.mrb[0].mxu0 %v653
        %v707 = vpop.f32.mrb[0].mxu0
        %v708 = vadd.f32 %v601, %v707
        %v709 = vpop.f32.mrb[0].mxu0
        %v710 = vpop.f32.mrb[0].mxu0
        %v711 = vadd.f32 %v606, %v710
        %v712 = vpop.f32.mrb[0].mxu0
        %713 = vmatprep.mubr.bf16.mxu0 0
        %714 = vmatmul.mubr.bf16.gmra.mrb[0].mxu0 %v656
        %v715 = vpop.f32.mrb[0].mxu0
        %v716 = vadd.f32 %v611, %v715
        %v717 = vpop.f32.mrb[0].mxu0
        %v718 = vpop.f32.mrb[0].mxu0
        %v719 = vadd.f32 %v616, %v718
        %v720 = vpop.f32.mrb[0].mxu0
        %721 = vmatprep.mubr.bf16.mxu0 0
        %722 = vmatmul.mubr.bf16.gmra.mrb[0].mxu0 %v659
        %v723 = vpop.f32.mrb[0].mxu0
        %v724 = vadd.f32 %v621, %v723
        %v725 = vpop.f32.mrb[0].mxu0
        %v726 = vpop.f32.mrb[0].mxu0
        %v727 = vadd.f32 %v626, %v726
        %v728 = vpop.f32.mrb[0].mxu0
        %729 = vdwg.mxu0
        %v730 = vmax.f32 %v700, 0.0
        %v731 = vmax.f32 %v703, 0.0
        %v732 = vmax.f32 %v708, 0.0
        %v733 = vmax.f32 %v711, 0.0
        %v734 = vmax.f32 %v716, 0.0
        %v735 = vmax.f32 %v719, 0.0
        %v736 = vmax.f32 %v724, 0.0
        %v737 = vmax.f32 %v727, 0.0
        %v738 = vpack.c.bf16 %v731, %v730
        %v739 = vpack.c.bf16 %v733, %v732
        %v740 = vpack.c.bf16 %v735, %v734
        %v741 = vpack.c.bf16 %v737, %v736
        %v742 = vld [vmem:[%s3] sm:$0xf]
        %v743 = vld [vmem:[%s3 + $0x4] sm:$0xf]
        %v744 = vld [vmem:[%s3 + $0x8] sm:$0xf]
        %v745 = vld [vmem:[%s3 + $0xc] sm:$0xf]
        %v746 = vld [vmem:[%s3 + $0x10] sm:$0xf]
        %v747 = vld [vmem:[%s3 + $0x14] sm:$0xf]
        %v748 = vld [vmem:[%s3 + $0x18] sm:$0xf]
        %v749 = vld [vmem:[%s3 + $0x1c] sm:$0xf]
        %v750 = vld [vmem:[%s3 + $0x20] sm:$0xf]
        %v751 = vld [vmem:[%s3 + $0x24] sm:$0xf]
        %v752 = vld [vmem:[%s3 + $0x28] sm:$0xf]
        %v753 = vld [vmem:[%s3 + $0x2c] sm:$0xf]
        %v754 = vld [vmem:[%s3 + $0x30] sm:$0xf]
        %v755 = vld [vmem:[%s3 + $0x34] sm:$0xf]
        %v756 = vld [vmem:[%s3 + $0x38] sm:$0xf]
        %v757 = vld [vmem:[%s3 + $0x3c] sm:$0xf]
        %v758 = vld [vmem:[%s4] sm:$0xff]
        %v759 = vld [vmem:[%s4 + $0x8] sm:$0xff]
        %v760 = vld [vmem:[%s4 + $0x10] sm:$0xff]
        %v761 = vld [vmem:[%s4 + $0x18] sm:$0xff]
        %v762 = vld [vmem:[%s4 + $0x20] sm:$0xff]
        %v763 = vld [vmem:[%s4 + $0x28] sm:$0xff]
        %v764 = vld [vmem:[%s4 + $0x30] sm:$0xff]
        %v765 = vld [vmem:[%s4 + $0x38] sm:$0xff]
        %v766 = vld [vmem:[%s4 + $0x40] sm:$0xff]
        %v767 = vld [vmem:[%s4 + $0x48] sm:$0xff]
        %v768 = vld [vmem:[%s4 + $0x50] sm:$0xff]
        %v769 = vld [vmem:[%s4 + $0x58] sm:$0xff]
        %v770 = vld [vmem:[%s4 + $0x60] sm:$0xff]
        %v771 = vld [vmem:[%s4 + $0x68] sm:$0xff]
        %v772 = vld [vmem:[%s4 + $0x70] sm:$0xff]
        %v773 = vld [vmem:[%s4 + $0x78] sm:$0xff]
        %775 = vset.pattern.permute.xlu0 0
        %776 = vperm.xlu0 %775, %v758
        %v777 = vpop.permute.xlu0 %776
        %780 = vset.pattern.permute.xlu0 0
        %781 = vperm.xlu0 %780, %v759
        %v782 = vpop.permute.xlu0 %781
        %785 = vset.pattern.permute.xlu0 0
        %786 = vperm.xlu0 %785, %v760
        %v787 = vpop.permute.xlu0 %786
        %790 = vset.pattern.permute.xlu0 0
        %791 = vperm.xlu0 %790, %v761
        %v792 = vpop.permute.xlu0 %791
        %795 = vset.pattern.permute.xlu0 0
        %796 = vperm.xlu0 %795, %v762
        %v797 = vpop.permute.xlu0 %796
        %800 = vset.pattern.permute.xlu0 0
        %801 = vperm.xlu0 %800, %v763
        %v802 = vpop.permute.xlu0 %801
        %805 = vset.pattern.permute.xlu0 0
        %806 = vperm.xlu0 %805, %v764
        %v807 = vpop.permute.xlu0 %806
        %810 = vset.pattern.permute.xlu0 0
        %811 = vperm.xlu0 %810, %v765
        %v812 = vpop.permute.xlu0 %811
        %815 = vset.pattern.permute.xlu0 0
        %816 = vperm.xlu0 %815, %v766
        %v817 = vpop.permute.xlu0 %816
        %820 = vset.pattern.permute.xlu0 0
        %821 = vperm.xlu0 %820, %v767
        %v822 = vpop.permute.xlu0 %821
        %825 = vset.pattern.permute.xlu0 0
        %826 = vperm.xlu0 %825, %v768
        %v827 = vpop.permute.xlu0 %826
        %830 = vset.pattern.permute.xlu0 0
        %831 = vperm.xlu0 %830, %v769
        %v832 = vpop.permute.xlu0 %831
        %835 = vset.pattern.permute.xlu0 0
        %836 = vperm.xlu0 %835, %v770
        %v837 = vpop.permute.xlu0 %836
        %840 = vset.pattern.permute.xlu0 0
        %841 = vperm.xlu0 %840, %v771
        %v842 = vpop.permute.xlu0 %841
        %845 = vset.pattern.permute.xlu0 0
        %846 = vperm.xlu0 %845, %v772
        %v847 = vpop.permute.xlu0 %846
        %850 = vset.pattern.permute.xlu0 0
        %851 = vperm.xlu0 %850, %v773
        %v852 = vpop.permute.xlu0 %851
        %v870 = vunpack.c.l.b16 %v742
        %v871 = vunpack.c.l.b16 %v743
        %v872 = vunpack.c.l.b16 %v744
        %v873 = vunpack.c.l.b16 %v745
        %v874 = vunpack.c.l.b16 %v746
        %v875 = vunpack.c.l.b16 %v747
        %v876 = vunpack.c.l.b16 %v748
        %v877 = vunpack.c.l.b16 %v749
        %v878 = vunpack.c.l.b16 %v750
        %v879 = vunpack.c.l.b16 %v751
        %v880 = vunpack.c.l.b16 %v752
        %v881 = vunpack.c.l.b16 %v753
        %v882 = vunpack.c.l.b16 %v754
        %v883 = vunpack.c.l.b16 %v755
        %v884 = vunpack.c.l.b16 %v756
        %v885 = vunpack.c.l.b16 %v757
        %v886 = vpack.c.b16 %v871, %v870
        %v887 = vpack.c.b16 %v873, %v872
        %v888 = vpack.c.b16 %v875, %v874
        %v889 = vpack.c.b16 %v877, %v876
        %v890 = vpack.c.b16 %v879, %v878
        %v891 = vpack.c.b16 %v881, %v880
        %v892 = vpack.c.b16 %v883, %v882
        %v893 = vpack.c.b16 %v885, %v884
        %vm894 = vcmask 523264
        %v896 = vsel %vm894, %v886, 0
        %v899 = vsel %vm894, %v887, 0
        %v902 = vsel %vm894, %v888, 0
        %v905 = vsel %vm894, %v889, 0
        %v908 = vsel %vm894, %v890, 0
        %v911 = vsel %vm894, %v891, 0
        %v914 = vsel %vm894, %v892, 0
        %v917 = vsel %vm894, %v893, 0
        %919 = vmatprep.subr.bf16.mxu0 0
        %920 = vmatpush1.bf16.msra.mxu0 %v738
        %921 = vmatprep.subr.bf16.mxu0 0
        %922 = vmatpush1.bf16.msra.mxu0 %v739
        %923 = vmatprep.subr.bf16.mxu0 0
        %924 = vmatpush1.bf16.msra.mxu0 %v740
        %925 = vmatprep.subr.bf16.mxu0 0
        %926 = vmatpush1.bf16.msra.mxu0 %v741
        %927 = vmatprep.subr.bf16.mxu0 0
        %928 = vmatpush1.bf16.msra.mxu0 0
        %929 = vmatprep.subr.bf16.mxu0 0
        %930 = vmatpush1.bf16.msra.mxu0 0
        %931 = vmatprep.subr.bf16.mxu0 0
        %932 = vmatpush1.bf16.msra.mxu0 0
        %933 = vmatprep.subr.bf16.mxu0 0
        %934 = vmatpush1.bf16.msra.mxu0 0
        %935 = vmatprep.subr.bf16.mxu0 0
        %936 = vmatpush1.bf16.msra.mxu0 0
        %937 = vmatprep.subr.bf16.mxu0 0
        %938 = vmatpush1.bf16.msra.mxu0 0
        %939 = vmatprep.subr.bf16.mxu0 0
        %940 = vmatpush1.bf16.msra.mxu0 0
        %941 = vmatprep.subr.bf16.mxu0 0
        %942 = vmatpush1.bf16.msra.mxu0 0
        %943 = vmatprep.subr.bf16.mxu0 0
        %944 = vmatpush1.bf16.msra.mxu0 0
        %945 = vmatprep.subr.bf16.mxu0 0
        %946 = vmatpush1.bf16.msra.mxu0 0
        %947 = vmatprep.subr.bf16.mxu0 0
        %948 = vmatpush1.bf16.msra.mxu0 0
        %949 = vmatprep.subr.bf16.mxu0 0
        %950 = vmatpush1.bf16.msra.mxu0 0
        %951 = vmatprep.mubr.bf16.mxu0 0
        %952 = vmatmul.mubr.bf16.gmra.mrb[0].mxu0 %v896
        %v953 = vpop.f32.mrb[0].mxu0
        %v954 = vadd.f32 %v777, %v953
        %v955 = vpop.f32.mrb[0].mxu0
        %v956 = vpop.f32.mrb[0].mxu0
        %v957 = vadd.f32 %v782, %v956
        %v958 = vpop.f32.mrb[0].mxu0
        %959 = vmatprep.mubr.bf16.mxu0 0
        %960 = vmatmul.mubr.bf16.gmra.mrb[0].mxu0 %v899
        %v961 = vpop.f32.mrb[0].mxu0
        %v962 = vadd.f32 %v787, %v961
        %v963 = vpop.f32.mrb[0].mxu0
        %v964 = vpop.f32.mrb[0].mxu0
        %v965 = vadd.f32 %v792, %v964
        %v966 = vpop.f32.mrb[0].mxu0
        %967 = vmatprep.mubr.bf16.mxu0 0
        %968 = vmatmul.mubr.bf16.gmra.mrb[0].mxu0 %v902
        %v969 = vpop.f32.mrb[0].mxu0
        %v970 = vadd.f32 %v797, %v969
        %v971 = vpop.f32.mrb[0].mxu0
        %v972 = vpop.f32.mrb[0].mxu0
        %v973 = vadd.f32 %v802, %v972
        %v974 = vpop.f32.mrb[0].mxu0
        %975 = vmatprep.mubr.bf16.mxu0 0
        %976 = vmatmul.mubr.bf16.gmra.mrb[0].mxu0 %v905
        %v977 = vpop.f32.mrb[0].mxu0
        %v978 = vadd.f32 %v807, %v977
        %v979 = vpop.f32.mrb[0].mxu0
        %v980 = vpop.f32.mrb[0].mxu0
        %v981 = vadd.f32 %v812, %v980
        %v982 = vpop.f32.mrb[0].mxu0
        %983 = vmatprep.mubr.bf16.mxu0 0
        %984 = vmatmul.mubr.bf16.gmra.mrb[0].mxu0 %v908
        %v985 = vpop.f32.mrb[0].mxu0
        %v986 = vadd.f32 %v817, %v985
        %v987 = vpop.f32.mrb[0].mxu0
        %v988 = vpop.f32.mrb[0].mxu0
        %v989 = vadd.f32 %v822, %v988
        %v990 = vpop.f32.mrb[0].mxu0
        %991 = vmatprep.mubr.bf16.mxu0 0
        %992 = vmatmul.mubr.bf16.gmra.mrb[0].mxu0 %v911
        %v993 = vpop.f32.mrb[0].mxu0
        %v994 = vadd.f32 %v827, %v993
        %v995 = vpop.f32.mrb[0].mxu0
        %v996 = vpop.f32.mrb[0].mxu0
        %v997 = vadd.f32 %v832, %v996
        %v998 = vpop.f32.mrb[0].mxu0
        %999 = vmatprep.mubr.bf16.mxu0 0
        %1000 = vmatmul.mubr.bf16.gmra.mrb[0].mxu0 %v914
        %v1001 = vpop.f32.mrb[0].mxu0
        %v1002 = vadd.f32 %v837, %v1001
        %v1003 = vpop.f32.mrb[0].mxu0
        %v1004 = vpop.f32.mrb[0].mxu0
        %v1005 = vadd.f32 %v842, %v1004
        %v1006 = vpop.f32.mrb[0].mxu0
        %1007 = vmatprep.mubr.bf16.mxu0 0
        %1008 = vmatmul.mubr.bf16.gmra.mrb[0].mxu0 %v917
        %v1009 = vpop.f32.mrb[0].mxu0
        %v1010 = vadd.f32 %v847, %v1009
        %v1011 = vpop.f32.mrb[0].mxu0
        %v1012 = vpop.f32.mrb[0].mxu0
        %v1013 = vadd.f32 %v852, %v1012
        %v1014 = vpop.f32.mrb[0].mxu0
        %1015 = vdwg.mxu0
        %v1016 = vmax.f32 %v954, 0.0
        %v1017 = vmax.f32 %v957, 0.0
        %v1018 = vmax.f32 %v962, 0.0
        %v1019 = vmax.f32 %v965, 0.0
        %v1020 = vmax.f32 %v970, 0.0
        %v1021 = vmax.f32 %v973, 0.0
        %v1022 = vmax.f32 %v978, 0.0
        %v1023 = vmax.f32 %v981, 0.0
        %v1024 = vmax.f32 %v986, 0.0
        %v1025 = vmax.f32 %v989, 0.0
        %v1026 = vmax.f32 %v994, 0.0
        %v1027 = vmax.f32 %v997, 0.0
        %v1028 = vmax.f32 %v1002, 0.0
        %v1029 = vmax.f32 %v1005, 0.0
        %v1030 = vmax.f32 %v1010, 0.0
        %v1031 = vmax.f32 %v1013, 0.0
        %v1032 = vpack.c.bf16 %v1017, %v1016
        %v1033 = vpack.c.bf16 %v1019, %v1018
        %v1034 = vpack.c.bf16 %v1021, %v1020
        %v1035 = vpack.c.bf16 %v1023, %v1022
        %v1036 = vpack.c.bf16 %v1025, %v1024
        %v1037 = vpack.c.bf16 %v1027, %v1026
        %v1038 = vpack.c.bf16 %v1029, %v1028
        %v1039 = vpack.c.bf16 %v1031, %v1030
        %v1040 = vld [vmem:[%s5] sm:$0xf]
        %v1041 = vld [vmem:[%s5 + $0x4] sm:$0xf]
        %v1042 = vld [vmem:[%s5 + $0x8] sm:$0xf]
        %v1043 = vld [vmem:[%s5 + $0xc] sm:$0xf]
        %v1044 = vld [vmem:[%s5 + $0x10] sm:$0xf]
        %v1045 = vld [vmem:[%s5 + $0x14] sm:$0xf]
        %v1046 = vld [vmem:[%s5 + $0x18] sm:$0xf]
        %v1047 = vld [vmem:[%s5 + $0x1c] sm:$0xf]
        %v1048 = vld [vmem:[%s5 + $0x20] sm:$0xf]
        %v1049 = vld [vmem:[%s5 + $0x24] sm:$0xf]
        %v1050 = vld [vmem:[%s5 + $0x28] sm:$0xf]
        %v1051 = vld [vmem:[%s5 + $0x2c] sm:$0xf]
        %v1052 = vld [vmem:[%s5 + $0x30] sm:$0xf]
        %v1053 = vld [vmem:[%s5 + $0x34] sm:$0xf]
        %v1054 = vld [vmem:[%s5 + $0x38] sm:$0xf]
        %v1055 = vld [vmem:[%s5 + $0x3c] sm:$0xf]
        %v1056 = vld [vmem:[%s5 + $0x40] sm:$0xf]
        %v1057 = vld [vmem:[%s5 + $0x44] sm:$0xf]
        %v1058 = vld [vmem:[%s5 + $0x48] sm:$0xf]
        %v1059 = vld [vmem:[%s5 + $0x4c] sm:$0xf]
        %v1060 = vld [vmem:[%s5 + $0x50] sm:$0xf]
        %v1061 = vld [vmem:[%s5 + $0x54] sm:$0xf]
        %v1062 = vld [vmem:[%s5 + $0x58] sm:$0xf]
        %v1063 = vld [vmem:[%s5 + $0x5c] sm:$0xf]
        %v1064 = vld [vmem:[%s5 + $0x60] sm:$0xf]
        %v1065 = vld [vmem:[%s5 + $0x64] sm:$0xf]
        %v1066 = vld [vmem:[%s5 + $0x68] sm:$0xf]
        %v1067 = vld [vmem:[%s5 + $0x6c] sm:$0xf]
        %v1068 = vld [vmem:[%s5 + $0x70] sm:$0xf]
        %v1069 = vld [vmem:[%s5 + $0x74] sm:$0xf]
        %v1070 = vld [vmem:[%s5 + $0x78] sm:$0xf]
        %v1071 = vld [vmem:[%s5 + $0x7c] sm:$0xf]
        %v1072 = vld [vmem:[%s6] sm:$0xff]
        %v1073 = vld [vmem:[%s6 + $0x8] sm:$0xff]
        %v1074 = vld [vmem:[%s6 + $0x10] sm:$0xff]
        %v1075 = vld [vmem:[%s6 + $0x18] sm:$0xff]
        %v1076 = vld [vmem:[%s6 + $0x20] sm:$0xff]
        %v1077 = vld [vmem:[%s6 + $0x28] sm:$0xff]
        %v1078 = vld [vmem:[%s6 + $0x30] sm:$0xff]
        %v1079 = vld [vmem:[%s6 + $0x38] sm:$0xff]
        %v1080 = vld [vmem:[%s6 + $0x40] sm:$0xff]
        %v1081 = vld [vmem:[%s6 + $0x48] sm:$0xff]
        %v1082 = vld [vmem:[%s6 + $0x50] sm:$0xff]
        %v1083 = vld [vmem:[%s6 + $0x58] sm:$0xff]
        %v1084 = vld [vmem:[%s6 + $0x60] sm:$0xff]
        %v1085 = vld [vmem:[%s6 + $0x68] sm:$0xff]
        %v1086 = vld [vmem:[%s6 + $0x70] sm:$0xff]
        %v1087 = vld [vmem:[%s6 + $0x78] sm:$0xff]
        %v1088 = vld [vmem:[%s6 + $0x80] sm:$0xff]
        %v1089 = vld [vmem:[%s6 + $0x88] sm:$0xff]
        %v1090 = vld [vmem:[%s6 + $0x90] sm:$0xff]
        %v1091 = vld [vmem:[%s6 + $0x98] sm:$0xff]
        %v1092 = vld [vmem:[%s6 + $0xa0] sm:$0xff]
        %v1093 = vld [vmem:[%s6 + $0xa8] sm:$0xff]
        %v1094 = vld [vmem:[%s6 + $0xb0] sm:$0xff]
        %v1095 = vld [vmem:[%s6 + $0xb8] sm:$0xff]
        %v1096 = vld [vmem:[%s6 + $0xc0] sm:$0xff]
        %v1097 = vld [vmem:[%s6 + $0xc8] sm:$0xff]
        %v1098 = vld [vmem:[%s6 + $0xd0] sm:$0xff]
        %v1099 = vld [vmem:[%s6 + $0xd8] sm:$0xff]
        %v1100 = vld [vmem:[%s6 + $0xe0] sm:$0xff]
        %v1101 = vld [vmem:[%s6 + $0xe8] sm:$0xff]
        %v1102 = vld [vmem:[%s6 + $0xf0] sm:$0xff]
        %v1103 = vld [vmem:[%s6 + $0xf8] sm:$0xff]
        %1105 = vset.pattern.permute.xlu0 0
        %1106 = vperm.xlu0 %1105, %v1072
        %v1107 = vpop.permute.xlu0 %1106
        %1110 = vset.pattern.permute.xlu0 0
        %1111 = vperm.xlu0 %1110, %v1073
        %v1112 = vpop.permute.xlu0 %1111
        %1115 = vset.pattern.permute.xlu0 0
        %1116 = vperm.xlu0 %1115, %v1074
        %v1117 = vpop.permute.xlu0 %1116
        %1120 = vset.pattern.permute.xlu0 0
        %1121 = vperm.xlu0 %1120, %v1075
        %v1122 = vpop.permute.xlu0 %1121
        %1125 = vset.pattern.permute.xlu0 0
        %1126 = vperm.xlu0 %1125, %v1076
        %v1127 = vpop.permute.xlu0 %1126
        %1130 = vset.pattern.permute.xlu0 0
        %1131 = vperm.xlu0 %1130, %v1077
        %v1132 = vpop.permute.xlu0 %1131
        %1135 = vset.pattern.permute.xlu0 0
        %1136 = vperm.xlu0 %1135, %v1078
        %v1137 = vpop.permute.xlu0 %1136
        %1140 = vset.pattern.permute.xlu0 0
        %1141 = vperm.xlu0 %1140, %v1079
        %v1142 = vpop.permute.xlu0 %1141
        %1145 = vset.pattern.permute.xlu0 0
        %1146 = vperm.xlu0 %1145, %v1080
        %v1147 = vpop.permute.xlu0 %1146
        %1150 = vset.pattern.permute.xlu0 0
        %1151 = vperm.xlu0 %1150, %v1081
        %v1152 = vpop.permute.xlu0 %1151
        %1155 = vset.pattern.permute.xlu0 0
        %1156 = vperm.xlu0 %1155, %v1082
        %v1157 = vpop.permute.xlu0 %1156
        %1160 = vset.pattern.permute.xlu0 0
        %1161 = vperm.xlu0 %1160, %v1083
        %v1162 = vpop.permute.xlu0 %1161
        %1165 = vset.pattern.permute.xlu0 0
        %1166 = vperm.xlu0 %1165, %v1084
        %v1167 = vpop.permute.xlu0 %1166
        %1170 = vset.pattern.permute.xlu0 0
        %1171 = vperm.xlu0 %1170, %v1085
        %v1172 = vpop.permute.xlu0 %1171
        %1175 = vset.pattern.permute.xlu0 0
        %1176 = vperm.xlu0 %1175, %v1086
        %v1177 = vpop.permute.xlu0 %1176
        %1180 = vset.pattern.permute.xlu0 0
        %1181 = vperm.xlu0 %1180, %v1087
        %v1182 = vpop.permute.xlu0 %1181
        %1185 = vset.pattern.permute.xlu0 0
        %1186 = vperm.xlu0 %1185, %v1088
        %v1187 = vpop.permute.xlu0 %1186
        %1190 = vset.pattern.permute.xlu0 0
        %1191 = vperm.xlu0 %1190, %v1089
        %v1192 = vpop.permute.xlu0 %1191
        %1195 = vset.pattern.permute.xlu0 0
        %1196 = vperm.xlu0 %1195, %v1090
        %v1197 = vpop.permute.xlu0 %1196
        %1200 = vset.pattern.permute.xlu0 0
        %1201 = vperm.xlu0 %1200, %v1091
        %v1202 = vpop.permute.xlu0 %1201
        %1205 = vset.pattern.permute.xlu0 0
        %1206 = vperm.xlu0 %1205, %v1092
        %v1207 = vpop.permute.xlu0 %1206
        %1210 = vset.pattern.permute.xlu0 0
        %1211 = vperm.xlu0 %1210, %v1093
        %v1212 = vpop.permute.xlu0 %1211
        %1215 = vset.pattern.permute.xlu0 0
        %1216 = vperm.xlu0 %1215, %v1094
        %v1217 = vpop.permute.xlu0 %1216
        %1220 = vset.pattern.permute.xlu0 0
        %1221 = vperm.xlu0 %1220, %v1095
        %v1222 = vpop.permute.xlu0 %1221
        %1225 = vset.pattern.permute.xlu0 0
        %1226 = vperm.xlu0 %1225, %v1096
        %v1227 = vpop.permute.xlu0 %1226
        %1230 = vset.pattern.permute.xlu0 0
        %1231 = vperm.xlu0 %1230, %v1097
        %v1232 = vpop.permute.xlu0 %1231
        %1235 = vset.pattern.permute.xlu0 0
        %1236 = vperm.xlu0 %1235, %v1098
        %v1237 = vpop.permute.xlu0 %1236
        %1240 = vset.pattern.permute.xlu0 0
        %1241 = vperm.xlu0 %1240, %v1099
        %v1242 = vpop.permute.xlu0 %1241
        %1245 = vset.pattern.permute.xlu0 0
        %1246 = vperm.xlu0 %1245, %v1100
        %v1247 = vpop.permute.xlu0 %1246
        %1250 = vset.pattern.permute.xlu0 0
        %1251 = vperm.xlu0 %1250, %v1101
        %v1252 = vpop.permute.xlu0 %1251
        %1255 = vset.pattern.permute.xlu0 0
        %1256 = vperm.xlu0 %1255, %v1102
        %v1257 = vpop.permute.xlu0 %1256
        %1260 = vset.pattern.permute.xlu0 0
        %1261 = vperm.xlu0 %1260, %v1103
        %v1262 = vpop.permute.xlu0 %1261
        %v1296 = vunpack.c.l.b16 %v1040
        %v1297 = vunpack.c.l.b16 %v1041
        %v1298 = vunpack.c.l.b16 %v1042
        %v1299 = vunpack.c.l.b16 %v1043
        %v1300 = vunpack.c.l.b16 %v1044
        %v1301 = vunpack.c.l.b16 %v1045
        %v1302 = vunpack.c.l.b16 %v1046
        %v1303 = vunpack.c.l.b16 %v1047
        %v1304 = vunpack.c.l.b16 %v1048
        %v1305 = vunpack.c.l.b16 %v1049
        %v1306 = vunpack.c.l.b16 %v1050
        %v1307 = vunpack.c.l.b16 %v1051
        %v1308 = vunpack.c.l.b16 %v1052
        %v1309 = vunpack.c.l.b16 %v1053
        %v1310 = vunpack.c.l.b16 %v1054
        %v1311 = vunpack.c.l.b16 %v1055
        %v1312 = vunpack.c.l.b16 %v1056
        %v1313 = vunpack.c.l.b16 %v1057
        %v1314 = vunpack.c.l.b16 %v1058
        %v1315 = vunpack.c.l.b16 %v1059
        %v1316 = vunpack.c.l.b16 %v1060
        %v1317 = vunpack.c.l.b16 %v1061
        %v1318 = vunpack.c.l.b16 %v1062
        %v1319 = vunpack.c.l.b16 %v1063
        %v1320 = vunpack.c.l.b16 %v1064
        %v1321 = vunpack.c.l.b16 %v1065
        %v1322 = vunpack.c.l.b16 %v1066
        %v1323 = vunpack.c.l.b16 %v1067
        %v1324 = vunpack.c.l.b16 %v1068
        %v1325 = vunpack.c.l.b16 %v1069
        %v1326 = vunpack.c.l.b16 %v1070
        %v1327 = vunpack.c.l.b16 %v1071
        %v1328 = vpack.c.b16 %v1297, %v1296
        %v1329 = vpack.c.b16 %v1299, %v1298
        %v1330 = vpack.c.b16 %v1301, %v1300
        %v1331 = vpack.c.b16 %v1303, %v1302
        %v1332 = vpack.c.b16 %v1305, %v1304
        %v1333 = vpack.c.b16 %v1307, %v1306
        %v1334 = vpack.c.b16 %v1309, %v1308
        %v1335 = vpack.c.b16 %v1311, %v1310
        %v1336 = vpack.c.b16 %v1313, %v1312
        %v1337 = vpack.c.b16 %v1315, %v1314
        %v1338 = vpack.c.b16 %v1317, %v1316
        %v1339 = vpack.c.b16 %v1319, %v1318
        %v1340 = vpack.c.b16 %v1321, %v1320
        %v1341 = vpack.c.b16 %v1323, %v1322
        %v1342 = vpack.c.b16 %v1325, %v1324
        %v1343 = vpack.c.b16 %v1327, %v1326
        %1360 = vmatprep.subr.bf16.mxu0 0
        %1361 = vmatpush1.bf16.msra.mxu0 %v1032
        %1362 = vmatprep.subr.bf16.mxu0 0
        %1363 = vmatpush1.bf16.msra.mxu0 %v1033
        %1364 = vmatprep.subr.bf16.mxu0 0
        %1365 = vmatpush1.bf16.msra.mxu0 %v1034
        %1366 = vmatprep.subr.bf16.mxu0 0
        %1367 = vmatpush1.bf16.msra.mxu0 %v1035
        %1368 = vmatprep.subr.bf16.mxu0 0
        %1369 = vmatpush1.bf16.msra.mxu0 %v1036
        %1370 = vmatprep.subr.bf16.mxu0 0
        %1371 = vmatpush1.bf16.msra.mxu0 %v1037
        %1372 = vmatprep.subr.bf16.mxu0 0
        %1373 = vmatpush1.bf16.msra.mxu0 %v1038
        %1374 = vmatprep.subr.bf16.mxu0 0
        %1375 = vmatpush1.bf16.msra.mxu0 %v1039
        %1376 = vmatprep.subr.bf16.mxu0 0
        %1377 = vmatpush1.bf16.msra.mxu0 0
        %1378 = vmatprep.subr.bf16.mxu0 0
        %1379 = vmatpush1.bf16.msra.mxu0 0
        %1380 = vmatprep.subr.bf16.mxu0 0
        %1381 = vmatpush1.bf16.msra.mxu0 0
        %1382 = vmatprep.subr.bf16.mxu0 0
        %1383 = vmatpush1.bf16.msra.mxu0 0
        %1384 = vmatprep.subr.bf16.mxu0 0
        %1385 = vmatpush1.bf16.msra.mxu0 0
        %1386 = vmatprep.subr.bf16.mxu0 0
        %1387 = vmatpush1.bf16.msra.mxu0 0
        %1388 = vmatprep.subr.bf16.mxu0 0
        %1389 = vmatpush1.bf16.msra.mxu0 0
        %1390 = vmatprep.subr.bf16.mxu0 0
        %1391 = vmatpush1.bf16.msra.mxu0 0
        %1392 = vmatprep.mubr.bf16.mxu0 0
        %1393 = vmatmul.mubr.bf16.gmra.mrb[0].mxu0 %v1328
        %v1394 = vpop.f32.mrb[0].mxu0
        %v1395 = vadd.f32 %v1107, %v1394
        %v1396 = vpop.f32.mrb[0].mxu0
        %v1397 = vpop.f32.mrb[0].mxu0
        %v1398 = vadd.f32 %v1112, %v1397
        %v1399 = vpop.f32.mrb[0].mxu0
        %1400 = vmatprep.mubr.bf16.mxu0 0
        %1401 = vmatmul.mubr.bf16.gmra.mrb[0].mxu0 %v1329
        %v1402 = vpop.f32.mrb[0].mxu0
        %v1403 = vadd.f32 %v1117, %v1402
        %v1404 = vpop.f32.mrb[0].mxu0
        %v1405 = vpop.f32.mrb[0].mxu0
        %v1406 = vadd.f32 %v1122, %v1405
        %v1407 = vpop.f32.mrb[0].mxu0
        %1408 = vmatprep.mubr.bf16.mxu0 0
        %1409 = vmatmul.mubr.bf16.gmra.mrb[0].mxu0 %v1330
        %v1410 = vpop.f32.mrb[0].mxu0
        %v1411 = vadd.f32 %v1127, %v1410
        %v1412 = vpop.f32.mrb[0].mxu0
        %v1413 = vpop.f32.mrb[0].mxu0
        %v1414 = vadd.f32 %v1132, %v1413
        %v1415 = vpop.f32.mrb[0].mxu0
        %1416 = vmatprep.mubr.bf16.mxu0 0
        %1417 = vmatmul.mubr.bf16.gmra.mrb[0].mxu0 %v1331
        %v1418 = vpop.f32.mrb[0].mxu0
        %v1419 = vadd.f32 %v1137, %v1418
        %v1420 = vpop.f32.mrb[0].mxu0
        %v1421 = vpop.f32.mrb[0].mxu0
        %v1422 = vadd.f32 %v1142, %v1421
        %v1423 = vpop.f32.mrb[0].mxu0
        %1424 = vmatprep.mubr.bf16.mxu0 0
        %1425 = vmatmul.mubr.bf16.gmra.mrb[0].mxu0 %v1332
        %v1426 = vpop.f32.mrb[0].mxu0
        %v1427 = vadd.f32 %v1147, %v1426
        %v1428 = vpop.f32.mrb[0].mxu0
        %v1429 = vpop.f32.mrb[0].mxu0
        %v1430 = vadd.f32 %v1152, %v1429
        %v1431 = vpop.f32.mrb[0].mxu0
        %1432 = vmatprep.mubr.bf16.mxu0 0
        %1433 = vmatmul.mubr.bf16.gmra.mrb[0].mxu0 %v1333
        %v1434 = vpop.f32.mrb[0].mxu0
        %v1435 = vadd.f32 %v1157, %v1434
        %v1436 = vpop.f32.mrb[0].mxu0
        %v1437 = vpop.f32.mrb[0].mxu0
        %v1438 = vadd.f32 %v1162, %v1437
        %v1439 = vpop.f32.mrb[0].mxu0
        %1440 = vmatprep.mubr.bf16.mxu0 0
        %1441 = vmatmul.mubr.bf16.gmra.mrb[0].mxu0 %v1334
        %v1442 = vpop.f32.mrb[0].mxu0
        %v1443 = vadd.f32 %v1167, %v1442
        %v1444 = vpop.f32.mrb[0].mxu0
        %v1445 = vpop.f32.mrb[0].mxu0
        %v1446 = vadd.f32 %v1172, %v1445
        %v1447 = vpop.f32.mrb[0].mxu0
        %1448 = vmatprep.mubr.bf16.mxu0 0
        %1449 = vmatmul.mubr.bf16.gmra.mrb[0].mxu0 %v1335
        %v1450 = vpop.f32.mrb[0].mxu0
        %v1451 = vadd.f32 %v1177, %v1450
        %v1452 = vpop.f32.mrb[0].mxu0
        %v1453 = vpop.f32.mrb[0].mxu0
        %v1454 = vadd.f32 %v1182, %v1453
        %v1455 = vpop.f32.mrb[0].mxu0
        %1456 = vmatprep.mubr.bf16.mxu0 0
        %1457 = vmatmul.mubr.bf16.gmra.mrb[0].mxu0 %v1336
        %v1458 = vpop.f32.mrb[0].mxu0
        %v1459 = vadd.f32 %v1187, %v1458
        %v1460 = vpop.f32.mrb[0].mxu0
        %v1461 = vpop.f32.mrb[0].mxu0
        %v1462 = vadd.f32 %v1192, %v1461
        %v1463 = vpop.f32.mrb[0].mxu0
        %1464 = vmatprep.mubr.bf16.mxu0 0
        %1465 = vmatmul.mubr.bf16.gmra.mrb[0].mxu0 %v1337
        %v1466 = vpop.f32.mrb[0].mxu0
        %v1467 = vadd.f32 %v1197, %v1466
        %v1468 = vpop.f32.mrb[0].mxu0
        %v1469 = vpop.f32.mrb[0].mxu0
        %v1470 = vadd.f32 %v1202, %v1469
        %v1471 = vpop.f32.mrb[0].mxu0
        %1472 = vmatprep.mubr.bf16.mxu0 0
        %1473 = vmatmul.mubr.bf16.gmra.mrb[0].mxu0 %v1338
        %v1474 = vpop.f32.mrb[0].mxu0
        %v1475 = vadd.f32 %v1207, %v1474
        %v1476 = vpop.f32.mrb[0].mxu0
        %v1477 = vpop.f32.mrb[0].mxu0
        %v1478 = vadd.f32 %v1212, %v1477
        %v1479 = vpop.f32.mrb[0].mxu0
        %1480 = vmatprep.mubr.bf16.mxu0 0
        %1481 = vmatmul.mubr.bf16.gmra.mrb[0].mxu0 %v1339
        %v1482 = vpop.f32.mrb[0].mxu0
        %v1483 = vadd.f32 %v1217, %v1482
        %v1484 = vpop.f32.mrb[0].mxu0
        %v1485 = vpop.f32.mrb[0].mxu0
        %v1486 = vadd.f32 %v1222, %v1485
        %v1487 = vpop.f32.mrb[0].mxu0
        %1488 = vmatprep.mubr.bf16.mxu0 0
        %1489 = vmatmul.mubr.bf16.gmra.mrb[0].mxu0 %v1340
        %v1490 = vpop.f32.mrb[0].mxu0
        %v1491 = vadd.f32 %v1227, %v1490
        %v1492 = vpop.f32.mrb[0].mxu0
        %v1493 = vpop.f32.mrb[0].mxu0
        %v1494 = vadd.f32 %v1232, %v1493
        %v1495 = vpop.f32.mrb[0].mxu0
        %1496 = vmatprep.mubr.bf16.mxu0 0
        %1497 = vmatmul.mubr.bf16.gmra.mrb[0].mxu0 %v1341
        %v1498 = vpop.f32.mrb[0].mxu0
        %v1499 = vadd.f32 %v1237, %v1498
        %v1500 = vpop.f32.mrb[0].mxu0
        %v1501 = vpop.f32.mrb[0].mxu0
        %v1502 = vadd.f32 %v1242, %v1501
        %v1503 = vpop.f32.mrb[0].mxu0
        %1504 = vmatprep.mubr.bf16.mxu0 0
        %1505 = vmatmul.mubr.bf16.gmra.mrb[0].mxu0 %v1342
        %v1506 = vpop.f32.mrb[0].mxu0
        %v1507 = vadd.f32 %v1247, %v1506
        %v1508 = vpop.f32.mrb[0].mxu0
        %v1509 = vpop.f32.mrb[0].mxu0
        %v1510 = vadd.f32 %v1252, %v1509
        %v1511 = vpop.f32.mrb[0].mxu0
        %1512 = vmatprep.mubr.bf16.mxu0 0
        %1513 = vmatmul.mubr.bf16.gmra.mrb[0].mxu0 %v1343
        %v1514 = vpop.f32.mrb[0].mxu0
        %v1515 = vadd.f32 %v1257, %v1514
        %v1516 = vpop.f32.mrb[0].mxu0
        %v1517 = vpop.f32.mrb[0].mxu0
        %v1518 = vadd.f32 %v1262, %v1517
        %v1519 = vpop.f32.mrb[0].mxu0
        %1520 = vdwg.mxu0
        %v1521 = vmax.f32 %v1395, 0.0
        %v1522 = vmax.f32 %v1398, 0.0
        %v1523 = vmax.f32 %v1403, 0.0
        %v1524 = vmax.f32 %v1406, 0.0
        %v1525 = vmax.f32 %v1411, 0.0
        %v1526 = vmax.f32 %v1414, 0.0
        %v1527 = vmax.f32 %v1419, 0.0
        %v1528 = vmax.f32 %v1422, 0.0
        %v1529 = vmax.f32 %v1427, 0.0
        %v1530 = vmax.f32 %v1430, 0.0
        %v1531 = vmax.f32 %v1435, 0.0
        %v1532 = vmax.f32 %v1438, 0.0
        %v1533 = vmax.f32 %v1443, 0.0
        %v1534 = vmax.f32 %v1446, 0.0
        %v1535 = vmax.f32 %v1451, 0.0
        %v1536 = vmax.f32 %v1454, 0.0
        %v1537 = vmax.f32 %v1459, 0.0
        %v1538 = vmax.f32 %v1462, 0.0
        %v1539 = vmax.f32 %v1467, 0.0
        %v1540 = vmax.f32 %v1470, 0.0
        %v1541 = vmax.f32 %v1475, 0.0
        %v1542 = vmax.f32 %v1478, 0.0
        %v1543 = vmax.f32 %v1483, 0.0
        %v1544 = vmax.f32 %v1486, 0.0
        %v1545 = vmax.f32 %v1491, 0.0
        %v1546 = vmax.f32 %v1494, 0.0
        %v1547 = vmax.f32 %v1499, 0.0
        %v1548 = vmax.f32 %v1502, 0.0
        %v1549 = vmax.f32 %v1507, 0.0
        %v1550 = vmax.f32 %v1510, 0.0
        %v1551 = vmax.f32 %v1515, 0.0
        %v1552 = vmax.f32 %v1518, 0.0
        %v1553 = vpack.c.bf16 %v1522, %v1521
        %v1554 = vpack.c.bf16 %v1524, %v1523
        %v1555 = vpack.c.bf16 %v1526, %v1525
        %v1556 = vpack.c.bf16 %v1528, %v1527
        %v1557 = vpack.c.bf16 %v1530, %v1529
        %v1558 = vpack.c.bf16 %v1532, %v1531
        %v1559 = vpack.c.bf16 %v1534, %v1533
        %v1560 = vpack.c.bf16 %v1536, %v1535
        %v1561 = vpack.c.bf16 %v1538, %v1537
        %v1562 = vpack.c.bf16 %v1540, %v1539
        %v1563 = vpack.c.bf16 %v1542, %v1541
        %v1564 = vpack.c.bf16 %v1544, %v1543
        %v1565 = vpack.c.bf16 %v1546, %v1545
        %v1566 = vpack.c.bf16 %v1548, %v1547
        %v1567 = vpack.c.bf16 %v1550, %v1549
        %v1568 = vpack.c.bf16 %v1552, %v1551
        %v1569 = vld [vmem:[%s7] sm:$0xff]
        %v1570 = vld [vmem:[%s7 + $0x8] sm:$0xff]
        %v1571 = vld [vmem:[%s7 + $0x10] sm:$0xff]
        %v1572 = vld [vmem:[%s7 + $0x18] sm:$0xff]
        %v1573 = vld [vmem:[%s7 + $0x20] sm:$0xff]
        %v1574 = vld [vmem:[%s7 + $0x28] sm:$0xff]
        %v1575 = vld [vmem:[%s7 + $0x30] sm:$0xff]
        %v1576 = vld [vmem:[%s7 + $0x38] sm:$0xff]
        %v1577 = vld [vmem:[%s7 + $0x40] sm:$0xff]
        %v1578 = vld [vmem:[%s7 + $0x48] sm:$0xff]
        %v1579 = vld [vmem:[%s7 + $0x50] sm:$0xff]
        %v1580 = vld [vmem:[%s7 + $0x58] sm:$0xff]
        %v1581 = vld [vmem:[%s7 + $0x60] sm:$0xff]
        %v1582 = vld [vmem:[%s7 + $0x68] sm:$0xff]
        %v1583 = vld [vmem:[%s7 + $0x70] sm:$0xff]
        %v1584 = vld [vmem:[%s7 + $0x78] sm:$0xff]
        %v1585 = vld [vmem:[%s8] sm:$0xff]
        %v1586 = vld [vmem:[%s8 + $0x8] sm:$0xff]
        %v1587 = vld [vmem:[%s8 + $0x10] sm:$0xff]
        %v1588 = vld [vmem:[%s8 + $0x18] sm:$0xff]
        %v1589 = vld [vmem:[%s8 + $0x20] sm:$0xff]
        %v1590 = vld [vmem:[%s8 + $0x28] sm:$0xff]
        %v1591 = vld [vmem:[%s8 + $0x30] sm:$0xff]
        %v1592 = vld [vmem:[%s8 + $0x38] sm:$0xff]
        %v1593 = vld [vmem:[%s8 + $0x40] sm:$0xff]
        %v1594 = vld [vmem:[%s8 + $0x48] sm:$0xff]
        %v1595 = vld [vmem:[%s8 + $0x50] sm:$0xff]
        %v1596 = vld [vmem:[%s8 + $0x58] sm:$0xff]
        %v1597 = vld [vmem:[%s8 + $0x60] sm:$0xff]
        %v1598 = vld [vmem:[%s8 + $0x68] sm:$0xff]
        %v1599 = vld [vmem:[%s8 + $0x70] sm:$0xff]
        %v1600 = vld [vmem:[%s8 + $0x78] sm:$0xff]
        %1602 = vset.pattern.permute.xlu0 0
        %1603 = vperm.xlu0 %1602, %v1585
        %v1604 = vpop.permute.xlu0 %1603
        %1607 = vset.pattern.permute.xlu0 0
        %1608 = vperm.xlu0 %1607, %v1586
        %v1609 = vpop.permute.xlu0 %1608
        %1612 = vset.pattern.permute.xlu0 0
        %1613 = vperm.xlu0 %1612, %v1587
        %v1614 = vpop.permute.xlu0 %1613
        %1617 = vset.pattern.permute.xlu0 0
        %1618 = vperm.xlu0 %1617, %v1588
        %v1619 = vpop.permute.xlu0 %1618
        %1622 = vset.pattern.permute.xlu0 0
        %1623 = vperm.xlu0 %1622, %v1589
        %v1624 = vpop.permute.xlu0 %1623
        %1627 = vset.pattern.permute.xlu0 0
        %1628 = vperm.xlu0 %1627, %v1590
        %v1629 = vpop.permute.xlu0 %1628
        %1632 = vset.pattern.permute.xlu0 0
        %1633 = vperm.xlu0 %1632, %v1591
        %v1634 = vpop.permute.xlu0 %1633
        %1637 = vset.pattern.permute.xlu0 0
        %1638 = vperm.xlu0 %1637, %v1592
        %v1639 = vpop.permute.xlu0 %1638
        %1642 = vset.pattern.permute.xlu0 0
        %1643 = vperm.xlu0 %1642, %v1593
        %v1644 = vpop.permute.xlu0 %1643
        %1647 = vset.pattern.permute.xlu0 0
        %1648 = vperm.xlu0 %1647, %v1594
        %v1649 = vpop.permute.xlu0 %1648
        %1652 = vset.pattern.permute.xlu0 0
        %1653 = vperm.xlu0 %1652, %v1595
        %v1654 = vpop.permute.xlu0 %1653
        %1657 = vset.pattern.permute.xlu0 0
        %1658 = vperm.xlu0 %1657, %v1596
        %v1659 = vpop.permute.xlu0 %1658
        %1662 = vset.pattern.permute.xlu0 0
        %1663 = vperm.xlu0 %1662, %v1597
        %v1664 = vpop.permute.xlu0 %1663
        %1667 = vset.pattern.permute.xlu0 0
        %1668 = vperm.xlu0 %1667, %v1598
        %v1669 = vpop.permute.xlu0 %1668
        %1672 = vset.pattern.permute.xlu0 0
        %1673 = vperm.xlu0 %1672, %v1599
        %v1674 = vpop.permute.xlu0 %1673
        %1677 = vset.pattern.permute.xlu0 0
        %1678 = vperm.xlu0 %1677, %v1600
        %v1679 = vpop.permute.xlu0 %1678
        %v1697 = vunpack.c.l.b16 %v1569
        %v1698 = vunpack.c.h.b16 %v1569
        %v1699 = vunpack.c.l.b16 %v1570
        %v1700 = vunpack.c.h.b16 %v1570
        %v1701 = vunpack.c.l.b16 %v1571
        %v1702 = vunpack.c.h.b16 %v1571
        %v1703 = vunpack.c.l.b16 %v1572
        %v1704 = vunpack.c.h.b16 %v1572
        %v1705 = vunpack.c.l.b16 %v1573
        %v1706 = vunpack.c.h.b16 %v1573
        %v1707 = vunpack.c.l.b16 %v1574
        %v1708 = vunpack.c.h.b16 %v1574
        %v1709 = vunpack.c.l.b16 %v1575
        %v1710 = vunpack.c.h.b16 %v1575
        %v1711 = vunpack.c.l.b16 %v1576
        %v1712 = vunpack.c.h.b16 %v1576
        %v1713 = vunpack.c.l.b16 %v1577
        %v1714 = vunpack.c.h.b16 %v1577
        %v1715 = vunpack.c.l.b16 %v1578
        %v1716 = vunpack.c.h.b16 %v1578
        %v1717 = vunpack.c.l.b16 %v1579
        %v1718 = vunpack.c.h.b16 %v1579
        %v1719 = vunpack.c.l.b16 %v1580
        %v1720 = vunpack.c.h.b16 %v1580
        %v1721 = vunpack.c.l.b16 %v1581
        %v1722 = vunpack.c.h.b16 %v1581
        %v1723 = vunpack.c.l.b16 %v1582
        %v1724 = vunpack.c.h.b16 %v1582
        %v1725 = vunpack.c.l.b16 %v1583
        %v1726 = vunpack.c.h.b16 %v1583
        %v1727 = vunpack.c.l.b16 %v1584
        %v1728 = vunpack.c.h.b16 %v1584
        %v1729 = vpack.c.b16 %v1699, %v1697
        %v1730 = vpack.c.b16 %v1700, %v1698
        %v1731 = vpack.c.b16 %v1703, %v1701
        %v1732 = vpack.c.b16 %v1704, %v1702
        %v1733 = vpack.c.b16 %v1707, %v1705
        %v1734 = vpack.c.b16 %v1708, %v1706
        %v1735 = vpack.c.b16 %v1711, %v1709
        %v1736 = vpack.c.b16 %v1712, %v1710
        %v1737 = vpack.c.b16 %v1715, %v1713
        %v1738 = vpack.c.b16 %v1716, %v1714
        %v1739 = vpack.c.b16 %v1719, %v1717
        %v1740 = vpack.c.b16 %v1720, %v1718
        %v1741 = vpack.c.b16 %v1723, %v1721
        %v1742 = vpack.c.b16 %v1724, %v1722
        %v1743 = vpack.c.b16 %v1727, %v1725
        %v1744 = vpack.c.b16 %v1728, %v1726
        %1761 = vmatprep.subr.bf16.mxu0 0
        %1762 = vmatpush1.bf16.msra.mxu0 %v1553
        %1763 = vmatprep.subr.bf16.mxu0 0
        %1764 = vmatpush1.bf16.msra.mxu0 %v1554
        %1765 = vmatprep.subr.bf16.mxu0 0
        %1766 = vmatpush1.bf16.msra.mxu0 %v1555
        %1767 = vmatprep.subr.bf16.mxu0 0
        %1768 = vmatpush1.bf16.msra.mxu0 %v1556
        %1769 = vmatprep.subr.bf16.mxu0 0
        %1770 = vmatpush1.bf16.msra.mxu0 %v1557
        %1771 = vmatprep.subr.bf16.mxu0 0
        %1772 = vmatpush1.bf16.msra.mxu0 %v1558
        %1773 = vmatprep.subr.bf16.mxu0 0
        %1774 = vmatpush1.bf16.msra.mxu0 %v1559
        %1775 = vmatprep.subr.bf16.mxu0 0
        %1776 = vmatpush1.bf16.msra.mxu0 %v1560
        %1777 = vmatprep.subr.bf16.mxu0 0
        %1778 = vmatpush1.bf16.msra.mxu0 %v1561
        %1779 = vmatprep.subr.bf16.mxu0 0
        %1780 = vmatpush1.bf16.msra.mxu0 %v1562
        %1781 = vmatprep.subr.bf16.mxu0 0
        %1782 = vmatpush1.bf16.msra.mxu0 %v1563
        %1783 = vmatprep.subr.bf16.mxu0 0
        %1784 = vmatpush1.bf16.msra.mxu0 %v1564
        %1785 = vmatprep.subr.bf16.mxu0 0
        %1786 = vmatpush1.bf16.msra.mxu0 %v1565
        %1787 = vmatprep.subr.bf16.mxu0 0
        %1788 = vmatpush1.bf16.msra.mxu0 %v1566
        %1789 = vmatprep.subr.bf16.mxu0 0
        %1790 = vmatpush1.bf16.msra.mxu0 %v1567
        %1791 = vmatprep.subr.bf16.mxu0 0
        %1792 = vmatpush1.bf16.msra.mxu0 %v1568
        %1793 = vmatprep.mubr.bf16.mxu0 %v1730
        %1794 = vmatmul.mubr.bf16.gmra.mrb[0].mxu0 %v1729
        %v1795 = vpop.f32.mrb[0].mxu0
        %v1796 = vadd.f32 %v1604, %v1795
        %v1797 = vpop.f32.mrb[0].mxu0
        %v1798 = vpop.f32.mrb[0].mxu0
        %v1799 = vadd.f32 %v1609, %v1798
        %v1800 = vpop.f32.mrb[0].mxu0
        %1801 = vmatprep.mubr.bf16.mxu0 %v1732
        %1802 = vmatmul.mubr.bf16.gmra.mrb[0].mxu0 %v1731
        %v1803 = vpop.f32.mrb[0].mxu0
        %v1804 = vadd.f32 %v1614, %v1803
        %v1805 = vpop.f32.mrb[0].mxu0
        %v1806 = vpop.f32.mrb[0].mxu0
        %v1807 = vadd.f32 %v1619, %v1806
        %v1808 = vpop.f32.mrb[0].mxu0
        %1809 = vmatprep.mubr.bf16.mxu0 %v1734
        %1810 = vmatmul.mubr.bf16.gmra.mrb[0].mxu0 %v1733
        %v1811 = vpop.f32.mrb[0].mxu0
        %v1812 = vadd.f32 %v1624, %v1811
        %v1813 = vpop.f32.mrb[0].mxu0
        %v1814 = vpop.f32.mrb[0].mxu0
        %v1815 = vadd.f32 %v1629, %v1814
        %v1816 = vpop.f32.mrb[0].mxu0
        %1817 = vmatprep.mubr.bf16.mxu0 %v1736
        %1818 = vmatmul.mubr.bf16.gmra.mrb[0].mxu0 %v1735
        %v1819 = vpop.f32.mrb[0].mxu0
        %v1820 = vadd.f32 %v1634, %v1819
        %v1821 = vpop.f32.mrb[0].mxu0
        %v1822 = vpop.f32.mrb[0].mxu0
        %v1823 = vadd.f32 %v1639, %v1822
        %v1824 = vpop.f32.mrb[0].mxu0
        %1825 = vmatprep.mubr.bf16.mxu0 %v1738
        %1826 = vmatmul.mubr.bf16.gmra.mrb[0].mxu0 %v1737
        %v1827 = vpop.f32.mrb[0].mxu0
        %v1828 = vadd.f32 %v1644, %v1827
        %v1829 = vpop.f32.mrb[0].mxu0
        %v1830 = vpop.f32.mrb[0].mxu0
        %v1831 = vadd.f32 %v1649, %v1830
        %v1832 = vpop.f32.mrb[0].mxu0
        %1833 = vmatprep.mubr.bf16.mxu0 %v1740
        %1834 = vmatmul.mubr.bf16.gmra.mrb[0].mxu0 %v1739
        %v1835 = vpop.f32.mrb[0].mxu0
        %v1836 = vadd.f32 %v1654, %v1835
        %v1837 = vpop.f32.mrb[0].mxu0
        %v1838 = vpop.f32.mrb[0].mxu0
        %v1839 = vadd.f32 %v1659, %v1838
        %v1840 = vpop.f32.mrb[0].mxu0
        %1841 = vmatprep.mubr.bf16.mxu0 %v1742
        %1842 = vmatmul.mubr.bf16.gmra.mrb[0].mxu0 %v1741
        %v1843 = vpop.f32.mrb[0].mxu0
        %v1844 = vadd.f32 %v1664, %v1843
        %v1845 = vpop.f32.mrb[0].mxu0
        %v1846 = vpop.f32.mrb[0].mxu0
        %v1847 = vadd.f32 %v1669, %v1846
        %v1848 = vpop.f32.mrb[0].mxu0
        %1849 = vmatprep.mubr.bf16.mxu0 %v1744
        %1850 = vmatmul.mubr.bf16.gmra.mrb[0].mxu0 %v1743
        %v1851 = vpop.f32.mrb[0].mxu0
        %v1852 = vadd.f32 %v1674, %v1851
        %v1853 = vpop.f32.mrb[0].mxu0
        %v1854 = vpop.f32.mrb[0].mxu0
        %v1855 = vadd.f32 %v1679, %v1854
        %v1856 = vpop.f32.mrb[0].mxu0
        %1857 = vdwg.mxu0
        %v1858 = vmax.f32 %v1796, 0.0
        %v1859 = vmax.f32 %v1799, 0.0
        %v1860 = vmax.f32 %v1804, 0.0
        %v1861 = vmax.f32 %v1807, 0.0
        %v1862 = vmax.f32 %v1812, 0.0
        %v1863 = vmax.f32 %v1815, 0.0
        %v1864 = vmax.f32 %v1820, 0.0
        %v1865 = vmax.f32 %v1823, 0.0
        %v1866 = vmax.f32 %v1828, 0.0
        %v1867 = vmax.f32 %v1831, 0.0
        %v1868 = vmax.f32 %v1836, 0.0
        %v1869 = vmax.f32 %v1839, 0.0
        %v1870 = vmax.f32 %v1844, 0.0
        %v1871 = vmax.f32 %v1847, 0.0
        %v1872 = vmax.f32 %v1852, 0.0
        %v1873 = vmax.f32 %v1855, 0.0
        %v1874 = vpack.c.bf16 %v1859, %v1858
        %v1875 = vpack.c.bf16 %v1861, %v1860
        %v1876 = vpack.c.bf16 %v1863, %v1862
        %v1877 = vpack.c.bf16 %v1865, %v1864
        %v1878 = vpack.c.bf16 %v1867, %v1866
        %v1879 = vpack.c.bf16 %v1869, %v1868
        %v1880 = vpack.c.bf16 %v1871, %v1870
        %v1881 = vpack.c.bf16 %v1873, %v1872
        %v1882 = vld [vmem:[%s9] sm:$0xf]
        %v1883 = vld [vmem:[%s9 + $0x4] sm:$0xf]
        %v1884 = vld [vmem:[%s9 + $0x8] sm:$0xf]
        %v1885 = vld [vmem:[%s9 + $0xc] sm:$0xf]
        %v1886 = vld [vmem:[%s9 + $0x10] sm:$0xf]
        %v1887 = vld [vmem:[%s9 + $0x14] sm:$0xf]
        %v1888 = vld [vmem:[%s9 + $0x18] sm:$0xf]
        %v1889 = vld [vmem:[%s9 + $0x1c] sm:$0xf]
        %v1890 = vld [vmem:[%s10] sm:$0xf]
        %v1891 = vld [vmem:[%s10 + $0x4] sm:$0xf]
        %v1892 = vld [vmem:[%s10 + $0x8] sm:$0xf]
        %v1893 = vld [vmem:[%s10 + $0xc] sm:$0xf]
        %v1894 = vld [vmem:[%s10 + $0x10] sm:$0xf]
        %v1895 = vld [vmem:[%s10 + $0x14] sm:$0xf]
        %v1896 = vld [vmem:[%s10 + $0x18] sm:$0xf]
        %v1897 = vld [vmem:[%s10 + $0x1c] sm:$0xf]
        %v1906 = vunpack.c.l.b16 %v1890
        %v1907 = vunpack.c.l.b16 %v1891
        %v1908 = vunpack.c.l.b16 %v1892
        %v1909 = vunpack.c.l.b16 %v1893
        %v1910 = vunpack.c.l.b16 %v1894
        %v1911 = vunpack.c.l.b16 %v1895
        %v1912 = vunpack.c.l.b16 %v1896
        %v1913 = vunpack.c.l.b16 %v1897
        %v1914 = vpack.c.b16 %v1907, %v1906
        %v1915 = vpack.c.b16 %v1909, %v1908
        %v1916 = vpack.c.b16 %v1911, %v1910
        %v1917 = vpack.c.b16 %v1913, %v1912
        %1922 = vmatprep.subr.bf16.mxu0 0
        %1923 = vmatpush1.bf16.msra.mxu0 %v1874
        %1924 = vmatprep.subr.bf16.mxu0 0
        %1925 = vmatpush1.bf16.msra.mxu0 %v1875
        %1926 = vmatprep.subr.bf16.mxu0 0
        %1927 = vmatpush1.bf16.msra.mxu0 %v1876
        %1928 = vmatprep.subr.bf16.mxu0 0
        %1929 = vmatpush1.bf16.msra.mxu0 %v1877
        %1930 = vmatprep.subr.bf16.mxu0 0
        %1931 = vmatpush1.bf16.msra.mxu0 %v1878
        %1932 = vmatprep.subr.bf16.mxu0 0
        %1933 = vmatpush1.bf16.msra.mxu0 %v1879
        %1934 = vmatprep.subr.bf16.mxu0 0
        %1935 = vmatpush1.bf16.msra.mxu0 %v1880
        %1936 = vmatprep.subr.bf16.mxu0 0
        %1937 = vmatpush1.bf16.msra.mxu0 %v1881
        %1938 = vmatprep.subr.bf16.mxu0 0
        %1939 = vmatpush1.bf16.msra.mxu0 0
        %1940 = vmatprep.subr.bf16.mxu0 0
        %1941 = vmatpush1.bf16.msra.mxu0 0
        %1942 = vmatprep.subr.bf16.mxu0 0
        %1943 = vmatpush1.bf16.msra.mxu0 0
        %1944 = vmatprep.subr.bf16.mxu0 0
        %1945 = vmatpush1.bf16.msra.mxu0 0
        %1946 = vmatprep.subr.bf16.mxu0 0
        %1947 = vmatpush1.bf16.msra.mxu0 0
        %1948 = vmatprep.subr.bf16.mxu0 0
        %1949 = vmatpush1.bf16.msra.mxu0 0
        %1950 = vmatprep.subr.bf16.mxu0 0
        %1951 = vmatpush1.bf16.msra.mxu0 0
        %1952 = vmatprep.subr.bf16.mxu0 0
        %1953 = vmatpush1.bf16.msra.mxu0 0
        %1954 = vmatprep.mubr.bf16.mxu0 0
        %1955 = vmatmul.mubr.bf16.gmra.mrb[0].mxu0 %v1914
        %v1956 = vpop.f32.mrb[0].mxu0
        %v1957 = vadd.f32 0.0, %v1956
        %v1958 = vpop.f32.mrb[0].mxu0
        %v1959 = vpop.f32.mrb[0].mxu0
        %v1960 = vadd.f32 0.0, %v1959
        %v1961 = vpop.f32.mrb[0].mxu0
        %1962 = vmatprep.mubr.bf16.mxu0 0
        %1963 = vmatmul.mubr.bf16.gmra.mrb[0].mxu0 %v1915
        %v1964 = vpop.f32.mrb[0].mxu0
        %v1965 = vadd.f32 0.0, %v1964
        %v1966 = vpop.f32.mrb[0].mxu0
        %v1967 = vpop.f32.mrb[0].mxu0
        %v1968 = vadd.f32 0.0, %v1967
        %v1969 = vpop.f32.mrb[0].mxu0
        %1970 = vmatprep.mubr.bf16.mxu0 0
        %1971 = vmatmul.mubr.bf16.gmra.mrb[0].mxu0 %v1916
        %v1972 = vpop.f32.mrb[0].mxu0
        %v1973 = vadd.f32 0.0, %v1972
        %v1974 = vpop.f32.mrb[0].mxu0
        %v1975 = vpop.f32.mrb[0].mxu0
        %v1976 = vadd.f32 0.0, %v1975
        %v1977 = vpop.f32.mrb[0].mxu0
        %1978 = vmatprep.mubr.bf16.mxu0 0
        %1979 = vmatmul.mubr.bf16.gmra.mrb[0].mxu0 %v1917
        %v1980 = vpop.f32.mrb[0].mxu0
        %v1981 = vadd.f32 0.0, %v1980
        %v1982 = vpop.f32.mrb[0].mxu0
        %v1983 = vpop.f32.mrb[0].mxu0
        %v1984 = vadd.f32 0.0, %v1983
        %v1985 = vpop.f32.mrb[0].mxu0
        %1986 = vdwg.mxu0
        %v1995 = vunpack.c.l.b16 %v1882
        %v1996 = vunpack.c.l.b16 %v1883
        %v1997 = vunpack.c.l.b16 %v1884
        %v1998 = vunpack.c.l.b16 %v1885
        %v1999 = vunpack.c.l.b16 %v1886
        %v2000 = vunpack.c.l.b16 %v1887
        %v2001 = vunpack.c.l.b16 %v1888
        %v2002 = vunpack.c.l.b16 %v1889
        %v2003 = vpack.c.b16 %v1996, %v1995
        %v2004 = vpack.c.b16 %v1998, %v1997
        %v2005 = vpack.c.b16 %v2000, %v1999
        %v2006 = vpack.c.b16 %v2002, %v2001
        %2011 = vmatprep.subr.bf16.mxu0 0
        %2012 = vmatpush1.bf16.msra.mxu0 %v1032
        %2013 = vmatprep.subr.bf16.mxu0 0
        %2014 = vmatpush1.bf16.msra.mxu0 %v1033
        %2015 = vmatprep.subr.bf16.mxu0 0
        %2016 = vmatpush1.bf16.msra.mxu0 %v1034
        %2017 = vmatprep.subr.bf16.mxu0 0
        %2018 = vmatpush1.bf16.msra.mxu0 %v1035
        %2019 = vmatprep.subr.bf16.mxu0 0
        %2020 = vmatpush1.bf16.msra.mxu0 %v1036
        %2021 = vmatprep.subr.bf16.mxu0 0
        %2022 = vmatpush1.bf16.msra.mxu0 %v1037
        %2023 = vmatprep.subr.bf16.mxu0 0
        %2024 = vmatpush1.bf16.msra.mxu0 %v1038
        %2025 = vmatprep.subr.bf16.mxu0 0
        %2026 = vmatpush1.bf16.msra.mxu0 %v1039
        %2027 = vmatprep.subr.bf16.mxu0 0
        %2028 = vmatpush1.bf16.msra.mxu0 0
        %2029 = vmatprep.subr.bf16.mxu0 0
        %2030 = vmatpush1.bf16.msra.mxu0 0
        %2031 = vmatprep.subr.bf16.mxu0 0
        %2032 = vmatpush1.bf16.msra.mxu0 0
        %2033 = vmatprep.subr.bf16.mxu0 0
        %2034 = vmatpush1.bf16.msra.mxu0 0
        %2035 = vmatprep.subr.bf16.mxu0 0
        %2036 = vmatpush1.bf16.msra.mxu0 0
        %2037 = vmatprep.subr.bf16.mxu0 0
        %2038 = vmatpush1.bf16.msra.mxu0 0
        %2039 = vmatprep.subr.bf16.mxu0 0
        %2040 = vmatpush1.bf16.msra.mxu0 0
        %2041 = vmatprep.subr.bf16.mxu0 0
        %2042 = vmatpush1.bf16.msra.mxu0 0
        %2043 = vmatprep.mubr.bf16.mxu0 0
        %2044 = vmatmul.mubr.bf16.gmra.mrb[0].mxu0 %v2003
        %v2045 = vpop.f32.mrb[0].mxu0
        %v2046 = vadd.f32 %v1957, %v2045
        %v2047 = vpop.f32.mrb[0].mxu0
        %v2048 = vpop.f32.mrb[0].mxu0
        %v2049 = vadd.f32 %v1960, %v2048
        %v2050 = vpop.f32.mrb[0].mxu0
        %2051 = vmatprep.mubr.bf16.mxu0 0
        %2052 = vmatmul.mubr.bf16.gmra.mrb[0].mxu0 %v2004
        %v2053 = vpop.f32.mrb[0].mxu0
        %v2054 = vadd.f32 %v1965, %v2053
        %v2055 = vpop.f32.mrb[0].mxu0
        %v2056 = vpop.f32.mrb[0].mxu0
        %v2057 = vadd.f32 %v1968, %v2056
        %v2058 = vpop.f32.mrb[0].mxu0
        %2059 = vmatprep.mubr.bf16.mxu0 0
        %2060 = vmatmul.mubr.bf16.gmra.mrb[0].mxu0 %v2005
        %v2061 = vpop.f32.mrb[0].mxu0
        %v2062 = vadd.f32 %v1973, %v2061
        %v2063 = vpop.f32.mrb[0].mxu0
        %v2064 = vpop.f32.mrb[0].mxu0
        %v2065 = vadd.f32 %v1976, %v2064
        %v2066 = vpop.f32.mrb[0].mxu0
        %2067 = vmatprep.mubr.bf16.mxu0 0
        %2068 = vmatmul.mubr.bf16.gmra.mrb[0].mxu0 %v2006
        %v2069 = vpop.f32.mrb[0].mxu0
        %v2070 = vadd.f32 %v1981, %v2069
        %v2071 = vpop.f32.mrb[0].mxu0
        %v2072 = vpop.f32.mrb[0].mxu0
        %v2073 = vadd.f32 %v1984, %v2072
        %v2074 = vpop.f32.mrb[0].mxu0
        %2075 = vdwg.mxu0
        %v2076 = vld [vmem:[%s11] sm:$0xff]
        %v2077 = vld [vmem:[%s11 + $0x8] sm:$0xff]
        %v2078 = vld [vmem:[%s11 + $0x10] sm:$0xff]
        %v2079 = vld [vmem:[%s11 + $0x18] sm:$0xff]
        %v2080 = vld [vmem:[%s11 + $0x20] sm:$0xff]
        %v2081 = vld [vmem:[%s11 + $0x28] sm:$0xff]
        %v2082 = vld [vmem:[%s11 + $0x30] sm:$0xff]
        %v2083 = vld [vmem:[%s11 + $0x38] sm:$0xff]
        %2085 = vset.pattern.permute.xlu0 0
        %2086 = vperm.xlu0 %2085, %v2076
        %v2087 = vpop.permute.xlu0 %2086
        %2090 = vset.pattern.permute.xlu0 0
        %2091 = vperm.xlu0 %2090, %v2077
        %v2092 = vpop.permute.xlu0 %2091
        %2095 = vset.pattern.permute.xlu0 0
        %2096 = vperm.xlu0 %2095, %v2078
        %v2097 = vpop.permute.xlu0 %2096
        %2100 = vset.pattern.permute.xlu0 0
        %2101 = vperm.xlu0 %2100, %v2079
        %v2102 = vpop.permute.xlu0 %2101
        %2105 = vset.pattern.permute.xlu0 0
        %2106 = vperm.xlu0 %2105, %v2080
        %v2107 = vpop.permute.xlu0 %2106
        %2110 = vset.pattern.permute.xlu0 0
        %2111 = vperm.xlu0 %2110, %v2081
        %v2112 = vpop.permute.xlu0 %2111
        %2115 = vset.pattern.permute.xlu0 0
        %2116 = vperm.xlu0 %2115, %v2082
        %v2117 = vpop.permute.xlu0 %2116
        %2120 = vset.pattern.permute.xlu0 0
        %2121 = vperm.xlu0 %2120, %v2083
        %v2122 = vpop.permute.xlu0 %2121
        %v2124 = vadd.f32 %v2046, %v2087
        %v2125 = vadd.f32 %v2049, %v2092
        %v2126 = vadd.f32 %v2054, %v2097
        %v2127 = vadd.f32 %v2057, %v2102
        %v2128 = vadd.f32 %v2062, %v2107
        %v2129 = vadd.f32 %v2065, %v2112
        %v2130 = vadd.f32 %v2070, %v2117
        %v2131 = vadd.f32 %v2073, %v2122
        %v2132 = vmax.f32 %v2124, 0.0
        %v2133 = vmax.f32 %v2125, 0.0
        %v2134 = vmax.f32 %v2126, 0.0
        %v2135 = vmax.f32 %v2127, 0.0
        %v2136 = vmax.f32 %v2128, 0.0
        %v2137 = vmax.f32 %v2129, 0.0
        %v2138 = vmax.f32 %v2130, 0.0
        %v2139 = vmax.f32 %v2131, 0.0
        %v2140 = vpack.c.bf16 %v2133, %v2132
        %v2141 = vpack.c.bf16 %v2135, %v2134
        %v2142 = vpack.c.bf16 %v2137, %v2136
        %v2143 = vpack.c.bf16 %v2139, %v2138
        %v2144 = vld [vmem:[%s12] sm:$0xf]
        %v2145 = vld [vmem:[%s12 + $0x4] sm:$0xf]
        %v2146 = vld [vmem:[%s12 + $0x8] sm:$0xf]
        %v2147 = vld [vmem:[%s12 + $0xc] sm:$0xf]
        %v2148 = vld [vmem:[%s12 + $0x10] sm:$0xf]
        %v2149 = vld [vmem:[%s12 + $0x14] sm:$0xf]
        %v2150 = vld [vmem:[%s12 + $0x18] sm:$0xf]
        %v2151 = vld [vmem:[%s12 + $0x1c] sm:$0xf]
        %v2152 = vld [vmem:[%s13] sm:$0xf]
        %v2153 = vld [vmem:[%s13 + $0x4] sm:$0xf]
        %v2154 = vld [vmem:[%s13 + $0x8] sm:$0xf]
        %v2155 = vld [vmem:[%s13 + $0xc] sm:$0xf]
        %v2156 = vld [vmem:[%s13 + $0x10] sm:$0xf]
        %v2157 = vld [vmem:[%s13 + $0x14] sm:$0xf]
        %v2158 = vld [vmem:[%s13 + $0x18] sm:$0xf]
        %v2159 = vld [vmem:[%s13 + $0x1c] sm:$0xf]
        %v2168 = vunpack.c.l.b16 %v2152
        %v2169 = vunpack.c.l.b16 %v2153
        %v2170 = vunpack.c.l.b16 %v2154
        %v2171 = vunpack.c.l.b16 %v2155
        %v2172 = vunpack.c.l.b16 %v2156
        %v2173 = vunpack.c.l.b16 %v2157
        %v2174 = vunpack.c.l.b16 %v2158
        %v2175 = vunpack.c.l.b16 %v2159
        %v2176 = vpack.c.b16 %v2169, %v2168
        %v2177 = vpack.c.b16 %v2171, %v2170
        %v2178 = vpack.c.b16 %v2173, %v2172
        %v2179 = vpack.c.b16 %v2175, %v2174
        %v2181 = vsel %vm894, %v2176, 0
        %v2184 = vsel %vm894, %v2177, 0
        %v2187 = vsel %vm894, %v2178, 0
        %v2190 = vsel %vm894, %v2179, 0
        %2192 = vmatprep.subr.bf16.mxu0 0
        %2193 = vmatpush1.bf16.msra.mxu0 %v2140
        %2194 = vmatprep.subr.bf16.mxu0 0
        %2195 = vmatpush1.bf16.msra.mxu0 %v2141
        %2196 = vmatprep.subr.bf16.mxu0 0
        %2197 = vmatpush1.bf16.msra.mxu0 %v2142
        %2198 = vmatprep.subr.bf16.mxu0 0
        %2199 = vmatpush1.bf16.msra.mxu0 %v2143
        %2200 = vmatprep.subr.bf16.mxu0 0
        %2201 = vmatpush1.bf16.msra.mxu0 0
        %2202 = vmatprep.subr.bf16.mxu0 0
        %2203 = vmatpush1.bf16.msra.mxu0 0
        %2204 = vmatprep.subr.bf16.mxu0 0
        %2205 = vmatpush1.bf16.msra.mxu0 0
        %2206 = vmatprep.subr.bf16.mxu0 0
        %2207 = vmatpush1.bf16.msra.mxu0 0
        %2208 = vmatprep.subr.bf16.mxu0 0
        %2209 = vmatpush1.bf16.msra.mxu0 0
        %2210 = vmatprep.subr.bf16.mxu0 0
        %2211 = vmatpush1.bf16.msra.mxu0 0
        %2212 = vmatprep.subr.bf16.mxu0 0
        %2213 = vmatpush1.bf16.msra.mxu0 0
        %2214 = vmatprep.subr.bf16.mxu0 0
        %2215 = vmatpush1.bf16.msra.mxu0 0
        %2216 = vmatprep.subr.bf16.mxu0 0
        %2217 = vmatpush1.bf16.msra.mxu0 0
        %2218 = vmatprep.subr.bf16.mxu0 0
        %2219 = vmatpush1.bf16.msra.mxu0 0
        %2220 = vmatprep.subr.bf16.mxu0 0
        %2221 = vmatpush1.bf16.msra.mxu0 0
        %2222 = vmatprep.subr.bf16.mxu0 0
        %2223 = vmatpush1.bf16.msra.mxu0 0
        %2224 = vmatprep.mubr.bf16.mxu0 0
        %2225 = vmatmul.mubr.bf16.gmra.mrb[0].mxu0 %v2181
        %v2226 = vpop.f32.mrb[0].mxu0
        %v2227 = vadd.f32 0.0, %v2226
        %v2228 = vpop.f32.mrb[0].mxu0
        %v2229 = vpop.f32.mrb[0].mxu0
        %v2230 = vadd.f32 0.0, %v2229
        %v2231 = vpop.f32.mrb[0].mxu0
        %2232 = vmatprep.mubr.bf16.mxu0 0
        %2233 = vmatmul.mubr.bf16.gmra.mrb[0].mxu0 %v2184
        %v2234 = vpop.f32.mrb[0].mxu0
        %v2235 = vadd.f32 0.0, %v2234
        %v2236 = vpop.f32.mrb[0].mxu0
        %v2237 = vpop.f32.mrb[0].mxu0
        %v2238 = vadd.f32 0.0, %v2237
        %v2239 = vpop.f32.mrb[0].mxu0
        %2240 = vmatprep.mubr.bf16.mxu0 0
        %2241 = vmatmul.mubr.bf16.gmra.mrb[0].mxu0 %v2187
        %v2242 = vpop.f32.mrb[0].mxu0
        %v2243 = vadd.f32 0.0, %v2242
        %v2244 = vpop.f32.mrb[0].mxu0
        %v2245 = vpop.f32.mrb[0].mxu0
        %v2246 = vadd.f32 0.0, %v2245
        %v2247 = vpop.f32.mrb[0].mxu0
        %2248 = vmatprep.mubr.bf16.mxu0 0
        %2249 = vmatmul.mubr.bf16.gmra.mrb[0].mxu0 %v2190
        %v2250 = vpop.f32.mrb[0].mxu0
        %v2251 = vadd.f32 0.0, %v2250
        %v2252 = vpop.f32.mrb[0].mxu0
        %v2253 = vpop.f32.mrb[0].mxu0
        %v2254 = vadd.f32 0.0, %v2253
        %v2255 = vpop.f32.mrb[0].mxu0
        %2256 = vdwg.mxu0
        %v2265 = vunpack.c.l.b16 %v2144
        %v2266 = vunpack.c.l.b16 %v2145
        %v2267 = vunpack.c.l.b16 %v2146
        %v2268 = vunpack.c.l.b16 %v2147
        %v2269 = vunpack.c.l.b16 %v2148
        %v2270 = vunpack.c.l.b16 %v2149
        %v2271 = vunpack.c.l.b16 %v2150
        %v2272 = vunpack.c.l.b16 %v2151
        %v2273 = vpack.c.b16 %v2266, %v2265
        %v2274 = vpack.c.b16 %v2268, %v2267
        %v2275 = vpack.c.b16 %v2270, %v2269
        %v2276 = vpack.c.b16 %v2272, %v2271
        %v2278 = vsel %vm894, %v2273, 0
        %v2281 = vsel %vm894, %v2274, 0
        %v2284 = vsel %vm894, %v2275, 0
        %v2287 = vsel %vm894, %v2276, 0
        %2289 = vmatprep.subr.bf16.mxu0 0
        %2290 = vmatpush1.bf16.msra.mxu0 %v738
        %2291 = vmatprep.subr.bf16.mxu0 0
        %2292 = vmatpush1.bf16.msra.mxu0 %v739
        %2293 = vmatprep.subr.bf16.mxu0 0
        %2294 = vmatpush1.bf16.msra.mxu0 %v740
        %2295 = vmatprep.subr.bf16.mxu0 0
        %2296 = vmatpush1.bf16.msra.mxu0 %v741
        %2297 = vmatprep.subr.bf16.mxu0 0
        %2298 = vmatpush1.bf16.msra.mxu0 0
        %2299 = vmatprep.subr.bf16.mxu0 0
        %2300 = vmatpush1.bf16.msra.mxu0 0
        %2301 = vmatprep.subr.bf16.mxu0 0
        %2302 = vmatpush1.bf16.msra.mxu0 0
        %2303 = vmatprep.subr.bf16.mxu0 0
        %2304 = vmatpush1.bf16.msra.mxu0 0
        %2305 = vmatprep.subr.bf16.mxu0 0
        %2306 = vmatpush1.bf16.msra.mxu0 0
        %2307 = vmatprep.subr.bf16.mxu0 0
        %2308 = vmatpush1.bf16.msra.mxu0 0
        %2309 = vmatprep.subr.bf16.mxu0 0
        %2310 = vmatpush1.bf16.msra.mxu0 0
        %2311 = vmatprep.subr.bf16.mxu0 0
        %2312 = vmatpush1.bf16.msra.mxu0 0
        %2313 = vmatprep.subr.bf16.mxu0 0
        %2314 = vmatpush1.bf16.msra.mxu0 0
        %2315 = vmatprep.subr.bf16.mxu0 0
        %2316 = vmatpush1.bf16.msra.mxu0 0
        %2317 = vmatprep.subr.bf16.mxu0 0
        %2318 = vmatpush1.bf16.msra.mxu0 0
        %2319 = vmatprep.subr.bf16.mxu0 0
        %2320 = vmatpush1.bf16.msra.mxu0 0
        %2321 = vmatprep.mubr.bf16.mxu0 0
        %2322 = vmatmul.mubr.bf16.gmra.mrb[0].mxu0 %v2278
        %v2323 = vpop.f32.mrb[0].mxu0
        %v2324 = vadd.f32 %v2227, %v2323
        %v2325 = vpop.f32.mrb[0].mxu0
        %v2326 = vpop.f32.mrb[0].mxu0
        %v2327 = vadd.f32 %v2230, %v2326
        %v2328 = vpop.f32.mrb[0].mxu0
        %2329 = vmatprep.mubr.bf16.mxu0 0
        %2330 = vmatmul.mubr.bf16.gmra.mrb[0].mxu0 %v2281
        %v2331 = vpop.f32.mrb[0].mxu0
        %v2332 = vadd.f32 %v2235, %v2331
        %v2333 = vpop.f32.mrb[0].mxu0
        %v2334 = vpop.f32.mrb[0].mxu0
        %v2335 = vadd.f32 %v2238, %v2334
        %v2336 = vpop.f32.mrb[0].mxu0
        %2337 = vmatprep.mubr.bf16.mxu0 0
        %2338 = vmatmul.mubr.bf16.gmra.mrb[0].mxu0 %v2284
        %v2339 = vpop.f32.mrb[0].mxu0
        %v2340 = vadd.f32 %v2243, %v2339
        %v2341 = vpop.f32.mrb[0].mxu0
        %v2342 = vpop.f32.mrb[0].mxu0
        %v2343 = vadd.f32 %v2246, %v2342
        %v2344 = vpop.f32.mrb[0].mxu0
        %2345 = vmatprep.mubr.bf16.mxu0 0
        %2346 = vmatmul.mubr.bf16.gmra.mrb[0].mxu0 %v2287
        %v2347 = vpop.f32.mrb[0].mxu0
        %v2348 = vadd.f32 %v2251, %v2347
        %v2349 = vpop.f32.mrb[0].mxu0
        %v2350 = vpop.f32.mrb[0].mxu0
        %v2351 = vadd.f32 %v2254, %v2350
        %v2352 = vpop.f32.mrb[0].mxu0
        %2353 = vdwg.mxu0
        %v2354 = vld [vmem:[%s14] sm:$0xff]
        %v2355 = vld [vmem:[%s14 + $0x8] sm:$0xff]
        %v2356 = vld [vmem:[%s14 + $0x10] sm:$0xff]
        %v2357 = vld [vmem:[%s14 + $0x18] sm:$0xff]
        %v2358 = vld [vmem:[%s14 + $0x20] sm:$0xff]
        %v2359 = vld [vmem:[%s14 + $0x28] sm:$0xff]
        %v2360 = vld [vmem:[%s14 + $0x30] sm:$0xff]
        %v2361 = vld [vmem:[%s14 + $0x38] sm:$0xff]
        %2363 = vset.pattern.permute.xlu0 0
        %2364 = vperm.xlu0 %2363, %v2354
        %v2365 = vpop.permute.xlu0 %2364
        %2368 = vset.pattern.permute.xlu0 0
        %2369 = vperm.xlu0 %2368, %v2355
        %v2370 = vpop.permute.xlu0 %2369
        %2373 = vset.pattern.permute.xlu0 0
        %2374 = vperm.xlu0 %2373, %v2356
        %v2375 = vpop.permute.xlu0 %2374
        %2378 = vset.pattern.permute.xlu0 0
        %2379 = vperm.xlu0 %2378, %v2357
        %v2380 = vpop.permute.xlu0 %2379
        %2383 = vset.pattern.permute.xlu0 0
        %2384 = vperm.xlu0 %2383, %v2358
        %v2385 = vpop.permute.xlu0 %2384
        %2388 = vset.pattern.permute.xlu0 0
        %2389 = vperm.xlu0 %2388, %v2359
        %v2390 = vpop.permute.xlu0 %2389
        %2393 = vset.pattern.permute.xlu0 0
        %2394 = vperm.xlu0 %2393, %v2360
        %v2395 = vpop.permute.xlu0 %2394
        %2398 = vset.pattern.permute.xlu0 0
        %2399 = vperm.xlu0 %2398, %v2361
        %v2400 = vpop.permute.xlu0 %2399
        %v2402 = vadd.f32 %v2324, %v2365
        %v2403 = vadd.f32 %v2327, %v2370
        %v2404 = vadd.f32 %v2332, %v2375
        %v2405 = vadd.f32 %v2335, %v2380
        %v2406 = vadd.f32 %v2340, %v2385
        %v2407 = vadd.f32 %v2343, %v2390
        %v2408 = vadd.f32 %v2348, %v2395
        %v2409 = vadd.f32 %v2351, %v2400
        %v2410 = vmax.f32 %v2402, 0.0
        %v2411 = vmax.f32 %v2403, 0.0
        %v2412 = vmax.f32 %v2404, 0.0
        %v2413 = vmax.f32 %v2405, 0.0
        %v2414 = vmax.f32 %v2406, 0.0
        %v2415 = vmax.f32 %v2407, 0.0
        %v2416 = vmax.f32 %v2408, 0.0
        %v2417 = vmax.f32 %v2409, 0.0
        %v2418 = vpack.c.bf16 %v2411, %v2410
        %v2419 = vpack.c.bf16 %v2413, %v2412
        %v2420 = vpack.c.bf16 %v2415, %v2414
        %v2421 = vpack.c.bf16 %v2417, %v2416
        %v2422 = vld [vmem:[%s15] sm:$0x3]
        %v2423 = vld [vmem:[%s16] sm:$0xf]
        %2425 = vset.pattern.permute.xlu0 0
        %2426 = vperm.xlu0 %2425, %v2423
        %v2427 = vpop.permute.xlu0 %2426
        %v2430 = vsel %vm894, %v2422, 0
        %2432 = vmatprep.subr.bf16.mxu0 0
        %2433 = vmatpush1.bf16.msra.mxu0 %v2418
        %2434 = vmatprep.subr.bf16.mxu0 0
        %2435 = vmatpush1.bf16.msra.mxu0 %v2419
        %2436 = vmatprep.subr.bf16.mxu0 0
        %2437 = vmatpush1.bf16.msra.mxu0 %v2420
        %2438 = vmatprep.subr.bf16.mxu0 0
        %2439 = vmatpush1.bf16.msra.mxu0 %v2421
        %2440 = vmatprep.subr.bf16.mxu0 0
        %2441 = vmatpush1.bf16.msra.mxu0 0
        %2442 = vmatprep.subr.bf16.mxu0 0
        %2443 = vmatpush1.bf16.msra.mxu0 0
        %2444 = vmatprep.subr.bf16.mxu0 0
        %2445 = vmatpush1.bf16.msra.mxu0 0
        %2446 = vmatprep.subr.bf16.mxu0 0
        %2447 = vmatpush1.bf16.msra.mxu0 0
        %2448 = vmatprep.subr.bf16.mxu0 0
        %2449 = vmatpush1.bf16.msra.mxu0 0
        %2450 = vmatprep.subr.bf16.mxu0 0
        %2451 = vmatpush1.bf16.msra.mxu0 0
        %2452 = vmatprep.subr.bf16.mxu0 0
        %2453 = vmatpush1.bf16.msra.mxu0 0
        %2454 = vmatprep.subr.bf16.mxu0 0
        %2455 = vmatpush1.bf16.msra.mxu0 0
        %2456 = vmatprep.subr.bf16.mxu0 0
        %2457 = vmatpush1.bf16.msra.mxu0 0
        %2458 = vmatprep.subr.bf16.mxu0 0
        %2459 = vmatpush1.bf16.msra.mxu0 0
        %2460 = vmatprep.subr.bf16.mxu0 0
        %2461 = vmatpush1.bf16.msra.mxu0 0
        %2462 = vmatprep.subr.bf16.mxu0 0
        %2463 = vmatpush1.bf16.msra.mxu0 0
        %2464 = vmatprep.mubr.bf16.mxu0 0
        %2465 = vmatmul.mubr.bf16.gmra.mrb[0].mxu0 %v2430
        %v2466 = vpop.f32.mrb[0].mxu0
        %v2467 = vadd.f32 %v2427, %v2466
        %v2468 = vpop.f32.mrb[0].mxu0
        %v2469 = vpop.f32.mrb[0].mxu0
        %v2470 = vpop.f32.mrb[0].mxu0
        %2471 = vdwg.mxu0
        %v2472 = vmax.f32 %v2467, 0.0
        %vm2473 = vcmask 125952
        %2474 = vst.msk [vmem:[%s561] sm:$0xf] %vm2473, %v2472
        %s2475 = sand.u32 %s417, 1
        %s2476 = scalar_lea.sflag [#allocation3], %s2475
        %s2477 = sand.u32 %s417, 1
        %s2478 = smul.addr %s2477, 4
        %s2479 = scalar_lea.vmem [#allocation2], %s2478
        // Predicated region
        $region89: #{tpu_custom_call.1} parent=87 // pred_check
          %p2480 = pneg %p427
        $region90: #{tpu_custom_call.1} parent=87 // pred_check_branch
          %2482 = sbr.rel (%p2480) target = $region92
        $region91: #{tpu_custom_call.1} parent=87 // pred_region
          %s2484 = ssub.s32 64, 64
          %2485 = vsyncadd %s2476, %s2484
          %s2486 = sadd.s32 %s36, %s35
          %s2487 = smul.addr %s2486, 64
          %s2488 = scalar_lea.hbm %s17, %s2487
          %s2490 = sshll.u32 %s2479, 4
          %s2491 = int_to_ptr.vmem [resolvable:$true] %s2490
          %2493 = dma.vmem_to_hbm [thread:$0]  %s2491, 64, %s2488, %s2476
        $region92: #{tpu_custom_call.1} parent=87 // pred_fallthru
          _
      $region88: #{tpu_custom_call.1} parent=5 // pred_fallthru
        _
      %p2494 = scmp.le.s32.totalorder 2, %s26
      // Predicated region
      $region93: #{tpu_custom_call.1} parent=5 // pred_check
        %p2495 = pneg %p2494
      $region94: #{tpu_custom_call.1} parent=5 // pred_check_branch
        %2497 = sbr.rel (%p2495) target = $region96
      $region95: #{tpu_custom_call.1} parent=5 // pred_region
        %s2498 = ssub.s32 %s26, 2
        // Predicated region
        $region97: #{tpu_custom_call.1} parent=95 // pred_check
          %p2499 = pneg %p433
        $region98: #{tpu_custom_call.1} parent=95 // pred_check_branch
          %2501 = sbr.rel (%p2499) target = $region100
        $region99: #{tpu_custom_call.1} parent=95 // pred_region
          %s2502 = sand.u32 %s418, 1
          %s2503 = scalar_lea.sflag [#allocation3], %s2502
          %s2504 = sand.u32 %s418, 1
          %s2505 = smul.addr %s2504, 4
          %s2506 = scalar_lea.vmem [#allocation2], %s2505
          %2507 = dma.done %s2503, 64
        $region100: #{tpu_custom_call.1} parent=95 // pred_fallthru
          _
      $region96: #{tpu_custom_call.1} parent=5 // pred_fallthru
        _
    $region6: #{tpu_custom_call.1} parent=1 // loop_footer
      %s30 = sadd.s32 1, %s26
    $region7: #{tpu_custom_call.1} parent=1 // loop_footer_branch
      %25 = sbr.rel target = $region3
    $region8: #{tpu_custom_call.1} parent=1 // loop_exit
      _
    %2508 = vsyncpa [#allocation3], 1
    %s2509 = scalar_lea.sflag [#allocation3], 1
    %2510 = vsyncpa %s2509, 1

</llo_original>
